<compile_context>
chip_gen: v5e
topology: v5e:2x2
jax: 0.10.0
libtpu: 0.0.40
codegen_flags: <defaults>
</compile_context>

<pallas_src>
import math
import functools

import jax
import jax.numpy as jnp
from jax import lax
from jax.experimental import pallas as pl
from jax.experimental.pallas import tpu as pltpu


# ----------------------------- Pallas kernel --------------------------------

def _layer_norm(h, g, b, eps=1e-5):
    mu = jnp.mean(h, axis=-1, keepdims=True)
    var = jnp.mean((h - mu) ** 2, axis=-1, keepdims=True)
    return (h - mu) * lax.rsqrt(var + eps) * g + b


def fused_model_kernel(x_ref, kbias_ref, mask_ref,
                       wqkv_ref, wo_ref, w1_ref, w2_ref, vec_ref,
                       o_ref, *, num_layers, num_heads, head_dim, hidden_dim):
    """Whole forward for one batch block: num_layers tied layers + final norm * mask."""
    Bt, S, D = x_ref.shape
    nh, hd, H = num_heads, head_dim, hidden_dim
    BS = Bt * S

    # ---- small vectors: read ONCE, hoisted out of the unrolled tied-layer loop ----
    vec = vec_ref[...]                       # (rows, max_dim) packed slab
    ln1_g, ln1_b = vec[0:1, :D], vec[1:2, :D]
    ln2_g, ln2_b = vec[2:3, :D], vec[3:4, :D]
    lnf_g, lnf_b = vec[4:5, :D], vec[5:6, :D]
    bo, b2 = vec[6:7, :D], vec[7:8, :D]
    b1 = vec[8:9, :H]
    bqkv = vec[9:10, :nh * 3 * hd]           # per-head blocks [bq*scale | bk | bv]

    kbias = kbias_ref[...]                   # (Bt, 1, S) additive key bias

    def layer(_, x):                         # x: (BS, D)
        # ---- self-attention sublayer ----
        h = _layer_norm(x, ln1_g, ln1_b)
        # fused Q/K/V projection: one (BS,D)@(D,3D) matmul; scale already folded into Wq/bq
        qkv = jnp.dot(h, wqkv_ref[...], preferred_element_type=jnp.float32) + bqkv
        qkv = qkv.reshape(Bt, S, nh * 3 * hd)

        attn = bo                            # (1, D) -> broadcasts on first accumulate
        for hh in range(nh):                 # static head loop; per-head lane slices
            base = hh * 3 * hd
            q = qkv[..., base:base + hd]
            k = qkv[..., base + hd:base + 2 * hd]
            v = qkv[..., base + 2 * hd:base + 3 * hd]
            s = jnp.einsum('bqe,bke->bqk', q, k,
                           preferred_element_type=jnp.float32) + kbias   # (Bt,S,S)
            s = s - jnp.max(s, axis=-1, keepdims=True)
            p = jnp.exp(s)
            p = p * pl.reciprocal(jnp.sum(p, axis=-1, keepdims=True), approx=True)
            ctx = jnp.einsum('bqk,bke->bqe', p, v,
                             preferred_element_type=jnp.float32).reshape(BS, hd)
            # fold head-sum into the output projection accumulation (no (nh,S,D) tensor)
            attn = attn + jnp.dot(ctx, wo_ref[hh * hd:(hh + 1) * hd, :],
                                  preferred_element_type=jnp.float32)

        x1 = attn + x                        # residual (dropout = identity at inference)

        # ---- MLP sublayer ----
        h2 = _layer_norm(x1, ln2_g, ln2_b)
        m = jnp.maximum(
            jnp.dot(h2, w1_ref[...], preferred_element_type=jnp.float32) + b1, 0.0)
        m = jnp.dot(m, w2_ref[...], preferred_element_type=jnp.float32) + b2
        return m + x1

    x = lax.fori_loop(0, num_layers, layer, x_ref[...].reshape(BS, D), unroll=True)

    # final LayerNorm * mask (mask pre-broadcast to (Bt,S,D) in the wrapper)
    o_ref[...] = _layer_norm(x, lnf_g, lnf_b).reshape(Bt, S, D) * mask_ref[...]


# ------------------------------ Wrapper --------------------------------------

def model_forward(input_ids, params, config, mask=None, batch_block=None):
    """Replicates Model.forward (inference: dropout = identity).

    batch_block=None (default): whole batch in a single grid step (best on v5e/v6e).
    batch_block=1: one batch element per grid step ("parallel" -> v7x 2nd TensorCore).
    """
    input_ids = input_ids.astype(jnp.int32)
    B, S = input_ids.shape
    D = config["embedding_dim"]
    nh = config["num_head"]
    hd = config["head_dim"]
    H = config["transformer_hidden_dim"]
    assert nh * hd == D

    # Embeddings (glue: tiny gather in plain JAX)
    X = (params["word_emb"][input_ids] + params["pos_emb"][:S][None]).astype(jnp.float32)

    if mask is None:
        mask = jnp.ones((B, S), dtype=jnp.float32)
    mask = mask.astype(jnp.float32)
    kbias = ((1.0 - mask) * (-1e6)).reshape(B, 1, S)                  # additive key bias
    mask_b = jnp.broadcast_to(mask[:, :, None], (B, S, D)).astype(jnp.float32)

    lp = params["layer"]                                              # tied weights
    scale = 1.0 / math.sqrt(hd)

    # ---- pack parameters (done once in the wrapper, free) ----
    # fused QKV weight: columns per head = [Wq_h*scale | Wk_h | Wv_h]
    wqkv = jnp.stack([(lp["wq"] * scale).reshape(D, nh, hd),
                      lp["wk"].reshape(D, nh, hd),
                      lp["wv"].reshape(D, nh, hd)], axis=2).reshape(D, nh * 3 * hd)
    bqkv = jnp.stack([(lp["bq"].reshape(-1) * scale).reshape(nh, hd),
                      lp["bk"].reshape(-1).reshape(nh, hd),
                      lp["bv"].reshape(-1).reshape(nh, hd)], axis=1).reshape(nh * 3 * hd)

    # vector slab: all LN gains/biases + all bias vectors in one (rows, max_dim) array
    W = max(D, H, nh * 3 * hd)

    def row(v):
        v = v.reshape(-1)
        return jnp.pad(v, (0, W - v.shape[0]))

    vec = jnp.stack([row(lp["ln1_g"]), row(lp["ln1_b"]),
                     row(lp["ln2_g"]), row(lp["ln2_b"]),
                     row(params["norm_g"]), row(params["norm_b"]),
                     row(lp["bo"]), row(lp["b2"]), row(lp["b1"]),
                     row(bqkv)]).astype(jnp.float32)

    Bt = B if batch_block is None else batch_block
    assert B % Bt == 0

    kernel = functools.partial(fused_model_kernel,
                               num_layers=config["num_layers"],
                               num_heads=nh, head_dim=hd, hidden_dim=H)

    def const(shape):
        return pl.BlockSpec(shape, lambda b: (0,) * len(shape))

    in_specs = [
        pl.BlockSpec((Bt, S, D), lambda b: (b, 0, 0)),   # X
        pl.BlockSpec((Bt, 1, S), lambda b: (b, 0, 0)),   # key bias
        pl.BlockSpec((Bt, S, D), lambda b: (b, 0, 0)),   # output mask (pre-broadcast)
        const((D, nh * 3 * hd)),                         # fused Wqkv
        const((D, D)),                                   # Wo
        const((D, H)),                                   # W1
        const((H, D)),                                   # W2
        const(vec.shape),                                # packed vector slab
    ]

    return pl.pallas_call(
        kernel,
        out_shape=jax.ShapeDtypeStruct((B, S, D), jnp.float32),
        grid_spec=pltpu.PrefetchScalarGridSpec(
            num_scalar_prefetch=0,
            grid=(B // Bt,),
            in_specs=in_specs,
            out_specs=pl.BlockSpec((Bt, S, D), lambda b: (b, 0, 0)),
        ),
        compiler_params=pltpu.CompilerParams(dimension_semantics=("parallel",)),
    )(X, kbias, mask_b, wqkv, lp["wo"], lp["w1"], lp["w2"], vec)


# --------------------------- Pure-JAX reference ------------------------------

def model_forward_ref(input_ids, params, config, mask=None):
    input_ids = input_ids.astype(jnp.int32)
    B, S = input_ids.shape
    D = config["embedding_dim"]
    nh, hd = config["num_head"], config["head_dim"]

    X = (params["word_emb"][input_ids] + params["pos_emb"][:S][None]).astype(jnp.float32)
    if mask is None:
        mask = jnp.ones((B, S), dtype=jnp.float32)
    mask = mask.astype(jnp.float32)
    bias = ((1.0 - mask) * (-1e6))[:, None, :]                  # (B, 1, S)

    lp = params["layer"]

    def ln(h, g, b, eps=1e-5):
        mu = jnp.mean(h, axis=-1, keepdims=True)
        var = jnp.mean((h - mu) ** 2, axis=-1, keepdims=True)
        return (h - mu) / jnp.sqrt(var + eps) * g + b

    scale = 1.0 / math.sqrt(hd)
    for _ in range(config["num_layers"]):
        h = ln(X, lp["ln1_g"], lp["ln1_b"])
        q = h @ lp["wq"] + lp["bq"]
        k = h @ lp["wk"] + lp["bk"]
        v = h @ lp["wv"] + lp["bv"]
        heads = []
        for hh in range(nh):
            sl = slice(hh * hd, (hh + 1) * hd)
            s = jnp.einsum('bqd,bkd->bqk', q[..., sl], k[..., sl]) * scale + bias
            p = jax.nn.softmax(s, axis=-1)
            heads.append(jnp.einsum('bqk,bkd->bqd', p, v[..., sl]))
        attn = jnp.concatenate(heads, axis=-1) @ lp["wo"] + lp["bo"]
        X = attn + X
        h2 = ln(X, lp["ln2_g"], lp["ln2_b"])
        X = (jnp.maximum(h2 @ lp["w1"] + lp["b1"], 0.0) @ lp["w2"] + lp["b2"]) + X

    return ln(X, params["norm_g"], params["norm_b"]) * mask[:, :, None]


# --------------------------- Parameter init ----------------------------------

def init_params(key, config):
    D = config["embedding_dim"]
    H = config["transformer_hidden_dim"]
    V = config["vocab_size"]
    L = config["max_seq_len"]

    keys = jax.random.split(key, 12)

    def lin(k, fan_in, fan_out):
        bound = 1.0 / math.sqrt(fan_in)
        kw, kb = jax.random.split(k)
        w = jax.random.uniform(kw, (fan_in, fan_out), jnp.float32, -bound, bound)
        b = jax.random.uniform(kb, (1, fan_out), jnp.float32, -bound, bound)
        return w, b

    wq, bq = lin(keys[0], D, D)
    wk, bk = lin(keys[1], D, D)
    wv, bv = lin(keys[2], D, D)
    wo, bo = lin(keys[3], D, D)
    w1, b1 = lin(keys[4], D, H)
    w2, b2 = lin(keys[5], H, D)

    layer = dict(
        ln1_g=jnp.ones((1, D), jnp.float32), ln1_b=jnp.zeros((1, D), jnp.float32),
        wq=wq, bq=bq, wk=wk, bk=bk, wv=wv, bv=bv, wo=wo, bo=bo,
        ln2_g=jnp.ones((1, D), jnp.float32), ln2_b=jnp.zeros((1, D), jnp.float32),
        w1=w1, b1=b1, w2=w2, b2=b2,
    )

    return dict(
        word_emb=0.02 * jax.random.normal(keys[6], (V, D), jnp.float32),
        pos_emb=0.02 * jax.random.normal(keys[7], (L, D), jnp.float32),
        layer=layer,
        norm_g=jnp.ones((1, D), jnp.float32),
        norm_b=jnp.zeros((1, D), jnp.float32),
    )


# --------------------------------- Main ---------------------------------------

if __name__ == "__main__":
    config = dict(
        embedding_dim=32,
        transformer_hidden_dim=64,
        num_head=2,
        head_dim=16,
        vocab_size=50,
        max_seq_len=16,
        num_layers=2,
        tied_weights=True,
        learn_pos_emb=True,
        dropout_prob=0.1,       # identity at inference
        attn_type="softmax",    # plain Transformer path (not blockformer)
    )

    key = jax.random.PRNGKey(0)
    kp, ki = jax.random.split(key)
    params = init_params(kp, config)

    B, S = 2, 8
    input_ids = jax.random.randint(ki, (B, S), 0, config["vocab_size"], dtype=jnp.int32)

    # non-trivial mask to exercise the key-bias / output-mask paths
    mask = jnp.ones((B, S), jnp.float32)
    mask = mask.at[1, S - 2:].set(0.0)

    out = model_forward(input_ids, params, config, mask=mask)
    out = jax.block_until_ready(out)

    assert out.shape == (B, S, config["embedding_dim"])
    assert jnp.all(jnp.isfinite(out))

    ref = model_forward_ref(input_ids, params, config, mask=mask)
    max_err = float(jnp.max(jnp.abs(out - ref)))
    assert max_err < 5e-2, f"mismatch vs reference: {max_err}"

    print("KERNEL_OK")
</pallas_src>

<mosaic_0001>
module attributes {stable_mosaic.version = 11 : i64} {
  func.func @fused_model_kernel(%arg0: i32, %arg1: memref<2x8x32xf32, #tpu.memory_space<vmem>>, %arg2: memref<2x1x8xf32, #tpu.memory_space<vmem>>, %arg3: memref<2x8x32xf32, #tpu.memory_space<vmem>>, %arg4: memref<32x96xf32, #tpu.memory_space<vmem>>, %arg5: memref<32x32xf32, #tpu.memory_space<vmem>>, %arg6: memref<32x64xf32, #tpu.memory_space<vmem>>, %arg7: memref<64x32xf32, #tpu.memory_space<vmem>>, %arg8: memref<10x96xf32, #tpu.memory_space<vmem>>, %arg9: memref<2x8x32xf32, #tpu.memory_space<vmem>>) attributes {dimension_semantics = [#tpu.dimension_semantics<parallel>], iteration_bounds = array<i64: 1>, scalar_prefetch = 0 : i64, scratch_operands = 0 : i64, tpu.core_type = #tpu.core_type<tc>, window_params = [{transform_indices = @transform_0, window_bounds = array<i64: 2, 8, 32>}, {transform_indices = @transform_1, window_bounds = array<i64: 2, 1, 8>}, {transform_indices = @transform_2, window_bounds = array<i64: 2, 8, 32>}, {pipeline_mode = #tpu.pipeline_mode<synchronous>, transform_indices = @transform_3, window_bounds = array<i64: 32, 96>}, {pipeline_mode = #tpu.pipeline_mode<synchronous>, transform_indices = @transform_4, window_bounds = array<i64: 32, 32>}, {pipeline_mode = #tpu.pipeline_mode<synchronous>, transform_indices = @transform_5, window_bounds = array<i64: 32, 64>}, {pipeline_mode = #tpu.pipeline_mode<synchronous>, transform_indices = @transform_6, window_bounds = array<i64: 64, 32>}, {pipeline_mode = #tpu.pipeline_mode<synchronous>, transform_indices = @transform_7, window_bounds = array<i64: 10, 96>}, {transform_indices = @transform_8, window_bounds = array<i64: 2, 8, 32>}]} {
    %c0 = arith.constant 0 : index
    %c0_0 = arith.constant 0 : index
    %0 = vector.load %arg8[%c0, %c0_0] : memref<10x96xf32, #tpu.memory_space<vmem>>, vector<10x96xf32>
    %1 = vector.extract_strided_slice %0 {offsets = [0, 0], sizes = [1, 32], strides = [1, 1]} : vector<10x96xf32> to vector<1x32xf32>
    %2 = vector.extract_strided_slice %0 {offsets = [1, 0], sizes = [1, 32], strides = [1, 1]} : vector<10x96xf32> to vector<1x32xf32>
    %3 = vector.extract_strided_slice %0 {offsets = [2, 0], sizes = [1, 32], strides = [1, 1]} : vector<10x96xf32> to vector<1x32xf32>
    %4 = vector.extract_strided_slice %0 {offsets = [3, 0], sizes = [1, 32], strides = [1, 1]} : vector<10x96xf32> to vector<1x32xf32>
    %5 = vector.extract_strided_slice %0 {offsets = [4, 0], sizes = [1, 32], strides = [1, 1]} : vector<10x96xf32> to vector<1x32xf32>
    %6 = vector.extract_strided_slice %0 {offsets = [5, 0], sizes = [1, 32], strides = [1, 1]} : vector<10x96xf32> to vector<1x32xf32>
    %7 = vector.extract_strided_slice %0 {offsets = [6, 0], sizes = [1, 32], strides = [1, 1]} : vector<10x96xf32> to vector<1x32xf32>
    %8 = vector.extract_strided_slice %0 {offsets = [7, 0], sizes = [1, 32], strides = [1, 1]} : vector<10x96xf32> to vector<1x32xf32>
    %9 = vector.extract_strided_slice %0 {offsets = [8, 0], sizes = [1, 64], strides = [1, 1]} : vector<10x96xf32> to vector<1x64xf32>
    %10 = vector.extract_strided_slice %0 {offsets = [9, 0], sizes = [1, 96], strides = [1, 1]} : vector<10x96xf32> to vector<1x96xf32>
    %c0_1 = arith.constant 0 : index
    %c0_2 = arith.constant 0 : index
    %c0_3 = arith.constant 0 : index
    %11 = vector.load %arg2[%c0_1, %c0_2, %c0_3] : memref<2x1x8xf32, #tpu.memory_space<vmem>>, vector<2x1x8xf32>
    %c0_4 = arith.constant 0 : index
    %c0_5 = arith.constant 0 : index
    %c0_6 = arith.constant 0 : index
    %12 = vector.load %arg1[%c0_4, %c0_5, %c0_6] : memref<2x8x32xf32, #tpu.memory_space<vmem>>, vector<2x8x32xf32>
    %13 = vector.shape_cast %12 : vector<2x8x32xf32> to vector<16x32xf32>
    %c0_i32 = arith.constant 0 : i32
    %cst = arith.constant dense<0.000000e+00> : vector<16xf32>
    %14 = vector.multi_reduction <add>, %13, %cst [1] : vector<16x32xf32> to vector<16xf32>
    %15 = vector.shape_cast %14 : vector<16xf32> to vector<16x1xf32>
    %cst_7 = arith.constant 3.200000e+01 : f32
    %16 = vector.broadcast %cst_7 : f32 to vector<16x1xf32>
    %17 = arith.divf %15, %16 : vector<16x1xf32>
    %18 = vector.broadcast %17 : vector<16x1xf32> to vector<16x32xf32>
    %19 = arith.subf %13, %18 : vector<16x32xf32>
    %20 = arith.mulf %19, %19 : vector<16x32xf32>
    %cst_8 = arith.constant dense<0.000000e+00> : vector<16xf32>
    %21 = vector.multi_reduction <add>, %20, %cst_8 [1] : vector<16x32xf32> to vector<16xf32>
    %22 = vector.shape_cast %21 : vector<16xf32> to vector<16x1xf32>
    %cst_9 = arith.constant 3.200000e+01 : f32
    %23 = vector.broadcast %cst_9 : f32 to vector<16x1xf32>
    %24 = arith.divf %22, %23 : vector<16x1xf32>
    %25 = vector.broadcast %17 : vector<16x1xf32> to vector<16x32xf32>
    %26 = arith.subf %13, %25 : vector<16x32xf32>
    %cst_10 = arith.constant 9.99999974E-6 : f32
    %27 = vector.broadcast %cst_10 : f32 to vector<16x1xf32>
    %28 = arith.addf %24, %27 : vector<16x1xf32>
    %29 = math.rsqrt %28 : vector<16x1xf32>
    %30 = vector.broadcast %29 : vector<16x1xf32> to vector<16x32xf32>
    %31 = arith.mulf %26, %30 : vector<16x32xf32>
    %32 = vector.broadcast %1 : vector<1x32xf32> to vector<16x32xf32>
    %33 = arith.mulf %31, %32 : vector<16x32xf32>
    %34 = vector.broadcast %2 : vector<1x32xf32> to vector<16x32xf32>
    %35 = arith.addf %33, %34 : vector<16x32xf32>
    %c0_11 = arith.constant 0 : index
    %c0_12 = arith.constant 0 : index
    %36 = vector.load %arg4[%c0_11, %c0_12] : memref<32x96xf32, #tpu.memory_space<vmem>>, vector<32x96xf32>
    %cst_13 = arith.constant dense<0.000000e+00> : vector<16x96xf32>
    %37 = tpu.matmul %35, %36, %cst_13 {dimension_numbers = #tpu.dot_dimension_numbers<[1], [0], [0], [1], [0, 0, 1, 1], [], []>} : vector<16x32xf32>, vector<32x96xf32>, vector<16x96xf32> -> vector<16x96xf32>
    %38 = vector.broadcast %10 : vector<1x96xf32> to vector<16x96xf32>
    %39 = arith.addf %37, %38 : vector<16x96xf32>
    %40 = vector.shape_cast %39 : vector<16x96xf32> to vector<2x8x96xf32>
    %41 = vector.extract_strided_slice %40 {offsets = [0, 0, 0], sizes = [2, 8, 16], strides = [1, 1, 1]} : vector<2x8x96xf32> to vector<2x8x16xf32>
    %42 = vector.extract_strided_slice %40 {offsets = [0, 0, 16], sizes = [2, 8, 16], strides = [1, 1, 1]} : vector<2x8x96xf32> to vector<2x8x16xf32>
    %43 = vector.extract_strided_slice %40 {offsets = [0, 0, 32], sizes = [2, 8, 16], strides = [1, 1, 1]} : vector<2x8x96xf32> to vector<2x8x16xf32>
    "tpu.trace_start"() <{level = 10 : i32, message = "bqe,bke->bqk"}> : () -> ()
    %cst_14 = arith.constant dense<0.000000e+00> : vector<2x8x8xf32>
    %44 = tpu.matmul %41, %42, %cst_14 {dimension_numbers = #tpu.dot_dimension_numbers<[2], [2], [1], [1], [0, 0, 0, 1, 1, 1], [0], [0]>} : vector<2x8x16xf32>, vector<2x8x16xf32>, vector<2x8x8xf32> -> vector<2x8x8xf32>
    "tpu.trace_stop"() : () -> ()
    %45 = vector.broadcast %11 : vector<2x1x8xf32> to vector<2x8x8xf32>
    %46 = arith.addf %44, %45 : vector<2x8x8xf32>
    %cst_15 = arith.constant dense<0xFF800000> : vector<2x8xf32>
    %47 = vector.multi_reduction <maximumf>, %46, %cst_15 [2] : vector<2x8x8xf32> to vector<2x8xf32>
    %48 = vector.shape_cast %47 : vector<2x8xf32> to vector<2x8x1xf32>
    %49 = vector.broadcast %48 : vector<2x8x1xf32> to vector<2x8x8xf32>
    %50 = arith.subf %46, %49 : vector<2x8x8xf32>
    %51 = math.exp %50 : vector<2x8x8xf32>
    %cst_16 = arith.constant dense<0.000000e+00> : vector<2x8xf32>
    %52 = vector.multi_reduction <add>, %51, %cst_16 [2] : vector<2x8x8xf32> to vector<2x8xf32>
    %53 = vector.shape_cast %52 : vector<2x8xf32> to vector<2x8x1xf32>
    %54 = tpu.reciprocal %53 {approx = true} : vector<2x8x1xf32> -> vector<2x8x1xf32>
    %55 = vector.broadcast %54 : vector<2x8x1xf32> to vector<2x8x8xf32>
    %56 = arith.mulf %51, %55 : vector<2x8x8xf32>
    "tpu.trace_start"() <{level = 10 : i32, message = "bqk,bke->bqe"}> : () -> ()
    %cst_17 = arith.constant dense<0.000000e+00> : vector<2x8x16xf32>
    %57 = tpu.matmul %56, %43, %cst_17 {dimension_numbers = #tpu.dot_dimension_numbers<[2], [1], [1], [2], [0, 0, 0, 1, 1, 2], [0], [0]>} : vector<2x8x8xf32>, vector<2x8x16xf32>, vector<2x8x16xf32> -> vector<2x8x16xf32>
    "tpu.trace_stop"() : () -> ()
    %58 = vector.shape_cast %57 : vector<2x8x16xf32> to vector<16x16xf32>
    %c0_18 = arith.constant 0 : index
    %c0_19 = arith.constant 0 : index
    %59 = vector.load %arg5[%c0_18, %c0_19] : memref<32x32xf32, #tpu.memory_space<vmem>>, vector<16x32xf32>
    %cst_20 = arith.constant dense<0.000000e+00> : vector<16x32xf32>
    %60 = tpu.matmul %58, %59, %cst_20 {dimension_numbers = #tpu.dot_dimension_numbers<[1], [0], [0], [1], [0, 0, 1, 1], [], []>} : vector<16x16xf32>, vector<16x32xf32>, vector<16x32xf32> -> vector<16x32xf32>
    %61 = vector.broadcast %7 : vector<1x32xf32> to vector<16x32xf32>
    %62 = arith.addf %61, %60 : vector<16x32xf32>
    %63 = vector.extract_strided_slice %40 {offsets = [0, 0, 48], sizes = [2, 8, 16], strides = [1, 1, 1]} : vector<2x8x96xf32> to vector<2x8x16xf32>
    %64 = vector.extract_strided_slice %40 {offsets = [0, 0, 64], sizes = [2, 8, 16], strides = [1, 1, 1]} : vector<2x8x96xf32> to vector<2x8x16xf32>
    %65 = vector.extract_strided_slice %40 {offsets = [0, 0, 80], sizes = [2, 8, 16], strides = [1, 1, 1]} : vector<2x8x96xf32> to vector<2x8x16xf32>
    "tpu.trace_start"() <{level = 10 : i32, message = "bqe,bke->bqk"}> : () -> ()
    %cst_21 = arith.constant dense<0.000000e+00> : vector<2x8x8xf32>
    %66 = tpu.matmul %63, %64, %cst_21 {dimension_numbers = #tpu.dot_dimension_numbers<[2], [2], [1], [1], [0, 0, 0, 1, 1, 1], [0], [0]>} : vector<2x8x16xf32>, vector<2x8x16xf32>, vector<2x8x8xf32> -> vector<2x8x8xf32>
    "tpu.trace_stop"() : () -> ()
    %67 = vector.broadcast %11 : vector<2x1x8xf32> to vector<2x8x8xf32>
    %68 = arith.addf %66, %67 : vector<2x8x8xf32>
    %cst_22 = arith.constant dense<0xFF800000> : vector<2x8xf32>
    %69 = vector.multi_reduction <maximumf>, %68, %cst_22 [2] : vector<2x8x8xf32> to vector<2x8xf32>
    %70 = vector.shape_cast %69 : vector<2x8xf32> to vector<2x8x1xf32>
    %71 = vector.broadcast %70 : vector<2x8x1xf32> to vector<2x8x8xf32>
    %72 = arith.subf %68, %71 : vector<2x8x8xf32>
    %73 = math.exp %72 : vector<2x8x8xf32>
    %cst_23 = arith.constant dense<0.000000e+00> : vector<2x8xf32>
    %74 = vector.multi_reduction <add>, %73, %cst_23 [2] : vector<2x8x8xf32> to vector<2x8xf32>
    %75 = vector.shape_cast %74 : vector<2x8xf32> to vector<2x8x1xf32>
    %76 = tpu.reciprocal %75 {approx = true} : vector<2x8x1xf32> -> vector<2x8x1xf32>
    %77 = vector.broadcast %76 : vector<2x8x1xf32> to vector<2x8x8xf32>
    %78 = arith.mulf %73, %77 : vector<2x8x8xf32>
    "tpu.trace_start"() <{level = 10 : i32, message = "bqk,bke->bqe"}> : () -> ()
    %cst_24 = arith.constant dense<0.000000e+00> : vector<2x8x16xf32>
    %79 = tpu.matmul %78, %65, %cst_24 {dimension_numbers = #tpu.dot_dimension_numbers<[2], [1], [1], [2], [0, 0, 0, 1, 1, 2], [0], [0]>} : vector<2x8x8xf32>, vector<2x8x16xf32>, vector<2x8x16xf32> -> vector<2x8x16xf32>
    "tpu.trace_stop"() : () -> ()
    %80 = vector.shape_cast %79 : vector<2x8x16xf32> to vector<16x16xf32>
    %c16 = arith.constant 16 : index
    %c0_25 = arith.constant 0 : index
    %81 = vector.load %arg5[%c16, %c0_25] : memref<32x32xf32, #tpu.memory_space<vmem>>, vector<16x32xf32>
    %cst_26 = arith.constant dense<0.000000e+00> : vector<16x32xf32>
    %82 = tpu.matmul %80, %81, %cst_26 {dimension_numbers = #tpu.dot_dimension_numbers<[1], [0], [0], [1], [0, 0, 1, 1], [], []>} : vector<16x16xf32>, vector<16x32xf32>, vector<16x32xf32> -> vector<16x32xf32>
    %83 = arith.addf %62, %82 : vector<16x32xf32>
    %84 = arith.addf %83, %13 : vector<16x32xf32>
    %cst_27 = arith.constant dense<0.000000e+00> : vector<16xf32>
    %85 = vector.multi_reduction <add>, %84, %cst_27 [1] : vector<16x32xf32> to vector<16xf32>
    %86 = vector.shape_cast %85 : vector<16xf32> to vector<16x1xf32>
    %cst_28 = arith.constant 3.200000e+01 : f32
    %87 = vector.broadcast %cst_28 : f32 to vector<16x1xf32>
    %88 = arith.divf %86, %87 : vector<16x1xf32>
    %89 = vector.broadcast %88 : vector<16x1xf32> to vector<16x32xf32>
    %90 = arith.subf %84, %89 : vector<16x32xf32>
    %91 = arith.mulf %90, %90 : vector<16x32xf32>
    %cst_29 = arith.constant dense<0.000000e+00> : vector<16xf32>
    %92 = vector.multi_reduction <add>, %91, %cst_29 [1] : vector<16x32xf32> to vector<16xf32>
    %93 = vector.shape_cast %92 : vector<16xf32> to vector<16x1xf32>
    %cst_30 = arith.constant 3.200000e+01 : f32
    %94 = vector.broadcast %cst_30 : f32 to vector<16x1xf32>
    %95 = arith.divf %93, %94 : vector<16x1xf32>
    %96 = vector.broadcast %88 : vector<16x1xf32> to vector<16x32xf32>
    %97 = arith.subf %84, %96 : vector<16x32xf32>
    %cst_31 = arith.constant 9.99999974E-6 : f32
    %98 = vector.broadcast %cst_31 : f32 to vector<16x1xf32>
    %99 = arith.addf %95, %98 : vector<16x1xf32>
    %100 = math.rsqrt %99 : vector<16x1xf32>
    %101 = vector.broadcast %100 : vector<16x1xf32> to vector<16x32xf32>
    %102 = arith.mulf %97, %101 : vector<16x32xf32>
    %103 = vector.broadcast %3 : vector<1x32xf32> to vector<16x32xf32>
    %104 = arith.mulf %102, %103 : vector<16x32xf32>
    %105 = vector.broadcast %4 : vector<1x32xf32> to vector<16x32xf32>
    %106 = arith.addf %104, %105 : vector<16x32xf32>
    %c0_32 = arith.constant 0 : index
    %c0_33 = arith.constant 0 : index
    %107 = vector.load %arg6[%c0_32, %c0_33] : memref<32x64xf32, #tpu.memory_space<vmem>>, vector<32x64xf32>
    %cst_34 = arith.constant dense<0.000000e+00> : vector<16x64xf32>
    %108 = tpu.matmul %106, %107, %cst_34 {dimension_numbers = #tpu.dot_dimension_numbers<[1], [0], [0], [1], [0, 0, 1, 1], [], []>} : vector<16x32xf32>, vector<32x64xf32>, vector<16x64xf32> -> vector<16x64xf32>
    %109 = vector.broadcast %9 : vector<1x64xf32> to vector<16x64xf32>
    %110 = arith.addf %108, %109 : vector<16x64xf32>
    %cst_35 = arith.constant 0.000000e+00 : f32
    %111 = vector.broadcast %cst_35 : f32 to vector<16x64xf32>
    %112 = arith.maximumf %110, %111 : vector<16x64xf32>
    %c0_36 = arith.constant 0 : index
    %c0_37 = arith.constant 0 : index
    %113 = vector.load %arg7[%c0_36, %c0_37] : memref<64x32xf32, #tpu.memory_space<vmem>>, vector<64x32xf32>
    %cst_38 = arith.constant dense<0.000000e+00> : vector<16x32xf32>
    %114 = tpu.matmul %112, %113, %cst_38 {dimension_numbers = #tpu.dot_dimension_numbers<[1], [0], [0], [1], [0, 0, 1, 1], [], []>} : vector<16x64xf32>, vector<64x32xf32>, vector<16x32xf32> -> vector<16x32xf32>
    %115 = vector.broadcast %8 : vector<1x32xf32> to vector<16x32xf32>
    %116 = arith.addf %114, %115 : vector<16x32xf32>
    %117 = arith.addf %116, %84 : vector<16x32xf32>
    %c1_i32 = arith.constant 1 : i32
    %cst_39 = arith.constant dense<0.000000e+00> : vector<16xf32>
    %118 = vector.multi_reduction <add>, %117, %cst_39 [1] : vector<16x32xf32> to vector<16xf32>
    %119 = vector.shape_cast %118 : vector<16xf32> to vector<16x1xf32>
    %cst_40 = arith.constant 3.200000e+01 : f32
    %120 = vector.broadcast %cst_40 : f32 to vector<16x1xf32>
    %121 = arith.divf %119, %120 : vector<16x1xf32>
    %122 = vector.broadcast %121 : vector<16x1xf32> to vector<16x32xf32>
    %123 = arith.subf %117, %122 : vector<16x32xf32>
    %124 = arith.mulf %123, %123 : vector<16x32xf32>
    %cst_41 = arith.constant dense<0.000000e+00> : vector<16xf32>
    %125 = vector.multi_reduction <add>, %124, %cst_41 [1] : vector<16x32xf32> to vector<16xf32>
    %126 = vector.shape_cast %125 : vector<16xf32> to vector<16x1xf32>
    %cst_42 = arith.constant 3.200000e+01 : f32
    %127 = vector.broadcast %cst_42 : f32 to vector<16x1xf32>
    %128 = arith.divf %126, %127 : vector<16x1xf32>
    %129 = vector.broadcast %121 : vector<16x1xf32> to vector<16x32xf32>
    %130 = arith.subf %117, %129 : vector<16x32xf32>
    %cst_43 = arith.constant 9.99999974E-6 : f32
    %131 = vector.broadcast %cst_43 : f32 to vector<16x1xf32>
    %132 = arith.addf %128, %131 : vector<16x1xf32>
    %133 = math.rsqrt %132 : vector<16x1xf32>
    %134 = vector.broadcast %133 : vector<16x1xf32> to vector<16x32xf32>
    %135 = arith.mulf %130, %134 : vector<16x32xf32>
    %136 = vector.broadcast %1 : vector<1x32xf32> to vector<16x32xf32>
    %137 = arith.mulf %135, %136 : vector<16x32xf32>
    %138 = vector.broadcast %2 : vector<1x32xf32> to vector<16x32xf32>
    %139 = arith.addf %137, %138 : vector<16x32xf32>
    %c0_44 = arith.constant 0 : index
    %c0_45 = arith.constant 0 : index
    %140 = vector.load %arg4[%c0_44, %c0_45] : memref<32x96xf32, #tpu.memory_space<vmem>>, vector<32x96xf32>
    %cst_46 = arith.constant dense<0.000000e+00> : vector<16x96xf32>
    %141 = tpu.matmul %139, %140, %cst_46 {dimension_numbers = #tpu.dot_dimension_numbers<[1], [0], [0], [1], [0, 0, 1, 1], [], []>} : vector<16x32xf32>, vector<32x96xf32>, vector<16x96xf32> -> vector<16x96xf32>
    %142 = vector.broadcast %10 : vector<1x96xf32> to vector<16x96xf32>
    %143 = arith.addf %141, %142 : vector<16x96xf32>
    %144 = vector.shape_cast %143 : vector<16x96xf32> to vector<2x8x96xf32>
    %145 = vector.extract_strided_slice %144 {offsets = [0, 0, 0], sizes = [2, 8, 16], strides = [1, 1, 1]} : vector<2x8x96xf32> to vector<2x8x16xf32>
    %146 = vector.extract_strided_slice %144 {offsets = [0, 0, 16], sizes = [2, 8, 16], strides = [1, 1, 1]} : vector<2x8x96xf32> to vector<2x8x16xf32>
    %147 = vector.extract_strided_slice %144 {offsets = [0, 0, 32], sizes = [2, 8, 16], strides = [1, 1, 1]} : vector<2x8x96xf32> to vector<2x8x16xf32>
    "tpu.trace_start"() <{level = 10 : i32, message = "bqe,bke->bqk"}> : () -> ()
    %cst_47 = arith.constant dense<0.000000e+00> : vector<2x8x8xf32>
    %148 = tpu.matmul %145, %146, %cst_47 {dimension_numbers = #tpu.dot_dimension_numbers<[2], [2], [1], [1], [0, 0, 0, 1, 1, 1], [0], [0]>} : vector<2x8x16xf32>, vector<2x8x16xf32>, vector<2x8x8xf32> -> vector<2x8x8xf32>
    "tpu.trace_stop"() : () -> ()
    %149 = vector.broadcast %11 : vector<2x1x8xf32> to vector<2x8x8xf32>
    %150 = arith.addf %148, %149 : vector<2x8x8xf32>
    %cst_48 = arith.constant dense<0xFF800000> : vector<2x8xf32>
    %151 = vector.multi_reduction <maximumf>, %150, %cst_48 [2] : vector<2x8x8xf32> to vector<2x8xf32>
    %152 = vector.shape_cast %151 : vector<2x8xf32> to vector<2x8x1xf32>
    %153 = vector.broadcast %152 : vector<2x8x1xf32> to vector<2x8x8xf32>
    %154 = arith.subf %150, %153 : vector<2x8x8xf32>
    %155 = math.exp %154 : vector<2x8x8xf32>
    %cst_49 = arith.constant dense<0.000000e+00> : vector<2x8xf32>
    %156 = vector.multi_reduction <add>, %155, %cst_49 [2] : vector<2x8x8xf32> to vector<2x8xf32>
    %157 = vector.shape_cast %156 : vector<2x8xf32> to vector<2x8x1xf32>
    %158 = tpu.reciprocal %157 {approx = true} : vector<2x8x1xf32> -> vector<2x8x1xf32>
    %159 = vector.broadcast %158 : vector<2x8x1xf32> to vector<2x8x8xf32>
    %160 = arith.mulf %155, %159 : vector<2x8x8xf32>
    "tpu.trace_start"() <{level = 10 : i32, message = "bqk,bke->bqe"}> : () -> ()
    %cst_50 = arith.constant dense<0.000000e+00> : vector<2x8x16xf32>
    %161 = tpu.matmul %160, %147, %cst_50 {dimension_numbers = #tpu.dot_dimension_numbers<[2], [1], [1], [2], [0, 0, 0, 1, 1, 2], [0], [0]>} : vector<2x8x8xf32>, vector<2x8x16xf32>, vector<2x8x16xf32> -> vector<2x8x16xf32>
    "tpu.trace_stop"() : () -> ()
    %162 = vector.shape_cast %161 : vector<2x8x16xf32> to vector<16x16xf32>
    %c0_51 = arith.constant 0 : index
    %c0_52 = arith.constant 0 : index
    %163 = vector.load %arg5[%c0_51, %c0_52] : memref<32x32xf32, #tpu.memory_space<vmem>>, vector<16x32xf32>
    %cst_53 = arith.constant dense<0.000000e+00> : vector<16x32xf32>
    %164 = tpu.matmul %162, %163, %cst_53 {dimension_numbers = #tpu.dot_dimension_numbers<[1], [0], [0], [1], [0, 0, 1, 1], [], []>} : vector<16x16xf32>, vector<16x32xf32>, vector<16x32xf32> -> vector<16x32xf32>
    %165 = vector.broadcast %7 : vector<1x32xf32> to vector<16x32xf32>
    %166 = arith.addf %165, %164 : vector<16x32xf32>
    %167 = vector.extract_strided_slice %144 {offsets = [0, 0, 48], sizes = [2, 8, 16], strides = [1, 1, 1]} : vector<2x8x96xf32> to vector<2x8x16xf32>
    %168 = vector.extract_strided_slice %144 {offsets = [0, 0, 64], sizes = [2, 8, 16], strides = [1, 1, 1]} : vector<2x8x96xf32> to vector<2x8x16xf32>
    %169 = vector.extract_strided_slice %144 {offsets = [0, 0, 80], sizes = [2, 8, 16], strides = [1, 1, 1]} : vector<2x8x96xf32> to vector<2x8x16xf32>
    "tpu.trace_start"() <{level = 10 : i32, message = "bqe,bke->bqk"}> : () -> ()
    %cst_54 = arith.constant dense<0.000000e+00> : vector<2x8x8xf32>
    %170 = tpu.matmul %167, %168, %cst_54 {dimension_numbers = #tpu.dot_dimension_numbers<[2], [2], [1], [1], [0, 0, 0, 1, 1, 1], [0], [0]>} : vector<2x8x16xf32>, vector<2x8x16xf32>, vector<2x8x8xf32> -> vector<2x8x8xf32>
    "tpu.trace_stop"() : () -> ()
    %171 = vector.broadcast %11 : vector<2x1x8xf32> to vector<2x8x8xf32>
    %172 = arith.addf %170, %171 : vector<2x8x8xf32>
    %cst_55 = arith.constant dense<0xFF800000> : vector<2x8xf32>
    %173 = vector.multi_reduction <maximumf>, %172, %cst_55 [2] : vector<2x8x8xf32> to vector<2x8xf32>
    %174 = vector.shape_cast %173 : vector<2x8xf32> to vector<2x8x1xf32>
    %175 = vector.broadcast %174 : vector<2x8x1xf32> to vector<2x8x8xf32>
    %176 = arith.subf %172, %175 : vector<2x8x8xf32>
    %177 = math.exp %176 : vector<2x8x8xf32>
    %cst_56 = arith.constant dense<0.000000e+00> : vector<2x8xf32>
    %178 = vector.multi_reduction <add>, %177, %cst_56 [2] : vector<2x8x8xf32> to vector<2x8xf32>
    %179 = vector.shape_cast %178 : vector<2x8xf32> to vector<2x8x1xf32>
    %180 = tpu.reciprocal %179 {approx = true} : vector<2x8x1xf32> -> vector<2x8x1xf32>
    %181 = vector.broadcast %180 : vector<2x8x1xf32> to vector<2x8x8xf32>
    %182 = arith.mulf %177, %181 : vector<2x8x8xf32>
    "tpu.trace_start"() <{level = 10 : i32, message = "bqk,bke->bqe"}> : () -> ()
    %cst_57 = arith.constant dense<0.000000e+00> : vector<2x8x16xf32>
    %183 = tpu.matmul %182, %169, %cst_57 {dimension_numbers = #tpu.dot_dimension_numbers<[2], [1], [1], [2], [0, 0, 0, 1, 1, 2], [0], [0]>} : vector<2x8x8xf32>, vector<2x8x16xf32>, vector<2x8x16xf32> -> vector<2x8x16xf32>
    "tpu.trace_stop"() : () -> ()
    %184 = vector.shape_cast %183 : vector<2x8x16xf32> to vector<16x16xf32>
    %c16_58 = arith.constant 16 : index
    %c0_59 = arith.constant 0 : index
    %185 = vector.load %arg5[%c16_58, %c0_59] : memref<32x32xf32, #tpu.memory_space<vmem>>, vector<16x32xf32>
    %cst_60 = arith.constant dense<0.000000e+00> : vector<16x32xf32>
    %186 = tpu.matmul %184, %185, %cst_60 {dimension_numbers = #tpu.dot_dimension_numbers<[1], [0], [0], [1], [0, 0, 1, 1], [], []>} : vector<16x16xf32>, vector<16x32xf32>, vector<16x32xf32> -> vector<16x32xf32>
    %187 = arith.addf %166, %186 : vector<16x32xf32>
    %188 = arith.addf %187, %117 : vector<16x32xf32>
    %cst_61 = arith.constant dense<0.000000e+00> : vector<16xf32>
    %189 = vector.multi_reduction <add>, %188, %cst_61 [1] : vector<16x32xf32> to vector<16xf32>
    %190 = vector.shape_cast %189 : vector<16xf32> to vector<16x1xf32>
    %cst_62 = arith.constant 3.200000e+01 : f32
    %191 = vector.broadcast %cst_62 : f32 to vector<16x1xf32>
    %192 = arith.divf %190, %191 : vector<16x1xf32>
    %193 = vector.broadcast %192 : vector<16x1xf32> to vector<16x32xf32>
    %194 = arith.subf %188, %193 : vector<16x32xf32>
    %195 = arith.mulf %194, %194 : vector<16x32xf32>
    %cst_63 = arith.constant dense<0.000000e+00> : vector<16xf32>
    %196 = vector.multi_reduction <add>, %195, %cst_63 [1] : vector<16x32xf32> to vector<16xf32>
    %197 = vector.shape_cast %196 : vector<16xf32> to vector<16x1xf32>
    %cst_64 = arith.constant 3.200000e+01 : f32
    %198 = vector.broadcast %cst_64 : f32 to vector<16x1xf32>
    %199 = arith.divf %197, %198 : vector<16x1xf32>
    %200 = vector.broadcast %192 : vector<16x1xf32> to vector<16x32xf32>
    %201 = arith.subf %188, %200 : vector<16x32xf32>
    %cst_65 = arith.constant 9.99999974E-6 : f32
    %202 = vector.broadcast %cst_65 : f32 to vector<16x1xf32>
    %203 = arith.addf %199, %202 : vector<16x1xf32>
    %204 = math.rsqrt %203 : vector<16x1xf32>
    %205 = vector.broadcast %204 : vector<16x1xf32> to vector<16x32xf32>
    %206 = arith.mulf %201, %205 : vector<16x32xf32>
    %207 = vector.broadcast %3 : vector<1x32xf32> to vector<16x32xf32>
    %208 = arith.mulf %206, %207 : vector<16x32xf32>
    %209 = vector.broadcast %4 : vector<1x32xf32> to vector<16x32xf32>
    %210 = arith.addf %208, %209 : vector<16x32xf32>
    %c0_66 = arith.constant 0 : index
    %c0_67 = arith.constant 0 : index
    %211 = vector.load %arg6[%c0_66, %c0_67] : memref<32x64xf32, #tpu.memory_space<vmem>>, vector<32x64xf32>
    %cst_68 = arith.constant dense<0.000000e+00> : vector<16x64xf32>
    %212 = tpu.matmul %210, %211, %cst_68 {dimension_numbers = #tpu.dot_dimension_numbers<[1], [0], [0], [1], [0, 0, 1, 1], [], []>} : vector<16x32xf32>, vector<32x64xf32>, vector<16x64xf32> -> vector<16x64xf32>
    %213 = vector.broadcast %9 : vector<1x64xf32> to vector<16x64xf32>
    %214 = arith.addf %212, %213 : vector<16x64xf32>
    %cst_69 = arith.constant 0.000000e+00 : f32
    %215 = vector.broadcast %cst_69 : f32 to vector<16x64xf32>
    %216 = arith.maximumf %214, %215 : vector<16x64xf32>
    %c0_70 = arith.constant 0 : index
    %c0_71 = arith.constant 0 : index
    %217 = vector.load %arg7[%c0_70, %c0_71] : memref<64x32xf32, #tpu.memory_space<vmem>>, vector<64x32xf32>
    %cst_72 = arith.constant dense<0.000000e+00> : vector<16x32xf32>
    %218 = tpu.matmul %216, %217, %cst_72 {dimension_numbers = #tpu.dot_dimension_numbers<[1], [0], [0], [1], [0, 0, 1, 1], [], []>} : vector<16x64xf32>, vector<64x32xf32>, vector<16x32xf32> -> vector<16x32xf32>
    %219 = vector.broadcast %8 : vector<1x32xf32> to vector<16x32xf32>
    %220 = arith.addf %218, %219 : vector<16x32xf32>
    %221 = arith.addf %220, %188 : vector<16x32xf32>
    %cst_73 = arith.constant dense<0.000000e+00> : vector<16xf32>
    %222 = vector.multi_reduction <add>, %221, %cst_73 [1] : vector<16x32xf32> to vector<16xf32>
    %223 = vector.shape_cast %222 : vector<16xf32> to vector<16x1xf32>
    %cst_74 = arith.constant 3.200000e+01 : f32
    %224 = vector.broadcast %cst_74 : f32 to vector<16x1xf32>
    %225 = arith.divf %223, %224 : vector<16x1xf32>
    %226 = vector.broadcast %225 : vector<16x1xf32> to vector<16x32xf32>
    %227 = arith.subf %221, %226 : vector<16x32xf32>
    %228 = arith.mulf %227, %227 : vector<16x32xf32>
    %cst_75 = arith.constant dense<0.000000e+00> : vector<16xf32>
    %229 = vector.multi_reduction <add>, %228, %cst_75 [1] : vector<16x32xf32> to vector<16xf32>
    %230 = vector.shape_cast %229 : vector<16xf32> to vector<16x1xf32>
    %cst_76 = arith.constant 3.200000e+01 : f32
    %231 = vector.broadcast %cst_76 : f32 to vector<16x1xf32>
    %232 = arith.divf %230, %231 : vector<16x1xf32>
    %233 = vector.broadcast %225 : vector<16x1xf32> to vector<16x32xf32>
    %234 = arith.subf %221, %233 : vector<16x32xf32>
    %cst_77 = arith.constant 9.99999974E-6 : f32
    %235 = vector.broadcast %cst_77 : f32 to vector<16x1xf32>
    %236 = arith.addf %232, %235 : vector<16x1xf32>
    %237 = math.rsqrt %236 : vector<16x1xf32>
    %238 = vector.broadcast %237 : vector<16x1xf32> to vector<16x32xf32>
    %239 = arith.mulf %234, %238 : vector<16x32xf32>
    %240 = vector.broadcast %5 : vector<1x32xf32> to vector<16x32xf32>
    %241 = arith.mulf %239, %240 : vector<16x32xf32>
    %242 = vector.broadcast %6 : vector<1x32xf32> to vector<16x32xf32>
    %243 = arith.addf %241, %242 : vector<16x32xf32>
    %244 = vector.shape_cast %243 : vector<16x32xf32> to vector<2x8x32xf32>
    %c0_78 = arith.constant 0 : index
    %c0_79 = arith.constant 0 : index
    %c0_80 = arith.constant 0 : index
    %245 = vector.load %arg3[%c0_78, %c0_79, %c0_80] : memref<2x8x32xf32, #tpu.memory_space<vmem>>, vector<2x8x32xf32>
    %246 = arith.mulf %244, %245 : vector<2x8x32xf32>
    %c0_81 = arith.constant 0 : index
    %c0_82 = arith.constant 0 : index
    %c0_83 = arith.constant 0 : index
    %247 = vector.load %arg9[%c0_81, %c0_82, %c0_83] : memref<2x8x32xf32, #tpu.memory_space<vmem>>, vector<2x8x32xf32>
    tpu.vector_store %arg9[%c0_81, %c0_82, %c0_83], %246 {strides = array<i32>} : memref<2x8x32xf32, #tpu.memory_space<vmem>>, vector<2x8x32xf32>,
    return
  }
  func.func @transform_0(%arg0: i32) -> (i32, i32, i32) {
    %c0_i32 = arith.constant 0 : i32
    %c0_i32_0 = arith.constant 0 : i32
    %c0_i32_1 = arith.constant 0 : i32
    return %arg0, %c0_i32, %c0_i32_0 : i32, i32, i32
  }
  func.func @transform_1(%arg0: i32) -> (i32, i32, i32) {
    %c0_i32 = arith.constant 0 : i32
    %c0_i32_0 = arith.constant 0 : i32
    %c0_i32_1 = arith.constant 0 : i32
    return %arg0, %c0_i32, %c0_i32_0 : i32, i32, i32
  }
  func.func @transform_2(%arg0: i32) -> (i32, i32, i32) {
    %c0_i32 = arith.constant 0 : i32
    %c0_i32_0 = arith.constant 0 : i32
    %c0_i32_1 = arith.constant 0 : i32
    return %arg0, %c0_i32, %c0_i32_0 : i32, i32, i32
  }
  func.func @transform_3(%arg0: i32) -> (i32, i32) {
    %c0_i32 = arith.constant 0 : i32
    %c0_i32_0 = arith.constant 0 : i32
    %c0_i32_1 = arith.constant 0 : i32
    return %c0_i32, %c0_i32_0 : i32, i32
  }
  func.func @transform_4(%arg0: i32) -> (i32, i32) {
    %c0_i32 = arith.constant 0 : i32
    %c0_i32_0 = arith.constant 0 : i32
    %c0_i32_1 = arith.constant 0 : i32
    return %c0_i32, %c0_i32_0 : i32, i32
  }
  func.func @transform_5(%arg0: i32) -> (i32, i32) {
    %c0_i32 = arith.constant 0 : i32
    %c0_i32_0 = arith.constant 0 : i32
    %c0_i32_1 = arith.constant 0 : i32
    return %c0_i32, %c0_i32_0 : i32, i32
  }
  func.func @transform_6(%arg0: i32) -> (i32, i32) {
    %c0_i32 = arith.constant 0 : i32
    %c0_i32_0 = arith.constant 0 : i32
    %c0_i32_1 = arith.constant 0 : i32
    return %c0_i32, %c0_i32_0 : i32, i32
  }
  func.func @transform_7(%arg0: i32) -> (i32, i32) {
    %c0_i32 = arith.constant 0 : i32
    %c0_i32_0 = arith.constant 0 : i32
    %c0_i32_1 = arith.constant 0 : i32
    return %c0_i32, %c0_i32_0 : i32, i32
  }
  func.func @transform_8(%arg0: i32) -> (i32, i32, i32) {
    %c0_i32 = arith.constant 0 : i32
    %c0_i32_0 = arith.constant 0 : i32
    %c0_i32_1 = arith.constant 0 : i32
    return %arg0, %c0_i32, %c0_i32_0 : i32, i32, i32
  }
}

</mosaic_0001>

<llo_original>
// kernel: tpu_custom_call.1
$region0: #{tpu_custom_call.1}
  #allocation0 [shape = 'u32[]', space=smem, size = 0x4, offset = 0x4, fixed_abs, tag = 'smem constant byte address 0x4 - core index']
  #allocation1 [shape = 'u32[72,128]{1,0:T(1,128)}', space=vmem, size = 0x9000, scoped, tag = 'internal scratch']
  %s0 = inlined_call_operand.hbm [shape: f32[2,8,32], index: 0, kind: input, shape index: {}]
  %s1 = inlined_call_operand.hbm [shape: f32[2,1,8], index: 1, kind: input, shape index: {}]
  %s2 = inlined_call_operand.hbm [shape: f32[2,8,32], index: 2, kind: input, shape index: {}]
  %s3 = inlined_call_operand.vmem [shape: f32[32,96], index: 3, kind: input, shape index: {}]
  %s4 = inlined_call_operand.vmem [shape: f32[32,32], index: 4, kind: input, shape index: {}]
  %s5 = inlined_call_operand.vmem [shape: f32[32,64], index: 5, kind: input, shape index: {}]
  %s6 = inlined_call_operand.vmem [shape: f32[64,32], index: 6, kind: input, shape index: {}]
  %s7 = inlined_call_operand.hbm [shape: f32[10,96], index: 7, kind: input, shape index: {}]
  %s8 = inlined_call_operand.hbm [shape: f32[2,8,32], index: 8, kind: output, shape index: {}]
  %s9 = sld [smem:[#allocation0]]
  $region58: #{tpu_custom_call.1} parent=0
    _
  %s11 = ssub.s32 1, %s9
  %s12 = scalar_select 0, %s11, %s9
  $region1: #{tpu_custom_call.1} parent=0
    #allocation2 [shape = 'u8[8192]{0}', space=vmem, size = 0x2000, scoped, tag = 'input window, operand 0, single buffered']
    #allocation3 [shape = 's32[1]{0}', space=sflag, size = 0x4, scoped, tag = 'scoped memory for tpu_custom_call.1']
    #allocation4 [shape = 's32[1]{0}', space=sflag, size = 0x4, scoped, tag = 'scoped memory for tpu_custom_call.1']
    #allocation5 [shape = 'u8[1024]{0}', space=vmem, size = 0x400, scoped, tag = 'input window, operand 1, single buffered']
    #allocation6 [shape = 's32[1]{0}', space=sflag, size = 0x4, scoped, tag = 'scoped memory for tpu_custom_call.1']
    #allocation7 [shape = 'u8[8192]{0}', space=vmem, size = 0x2000, scoped, tag = 'input window, operand 2, single buffered']
    #allocation8 [shape = 'u8[8192]{0}', space=vmem, size = 0x2000, scoped, tag = 'input window, operand 7, single buffered']
    #allocation9 [shape = 's32[1]{0}', space=sflag, size = 0x4, scoped, tag = 'scoped memory for tpu_custom_call.1']
    #allocation10 [shape = 'u8[8192]{0}', space=vmem, size = 0x2000, scoped, tag = 'output window, operand 0, single buffered']
    %13 = vsyncpa [#allocation3], 0
    %14 = vsyncpa [#allocation6], 0
    %15 = vsyncpa [#allocation9], 0
    %16 = vsyncpa [#allocation4], 0
    // Predicated region
    $region2: #{tpu_custom_call.1} parent=1 // pred_check
      _
    $region3: #{tpu_custom_call.1} parent=1 // pred_check_branch
      %18 = sbr.rel (0) target = $region5
    $region4: #{tpu_custom_call.1} parent=1 // pred_region
      %20 = vsyncadd [#allocation3], 0
      %s21 = sshll.u32 %s0, 4
      %s22 = int_to_ptr.hbm [resolvable:$true] %s21
      %s23 = sshll.u32 [#allocation2], 4
      %s24 = int_to_ptr.vmem [resolvable:$true] %s23
      %29 = dma.hbm_to_vmem [thread:$0]  %s22, 256, %s24, [#allocation3], 128, 128, 8
    $region5: #{tpu_custom_call.1} parent=1 // pred_fallthru
      _
    // Predicated region
    $region6: #{tpu_custom_call.1} parent=1 // pred_check
      _
    $region7: #{tpu_custom_call.1} parent=1 // pred_check_branch
      %31 = sbr.rel (0) target = $region9
    $region8: #{tpu_custom_call.1} parent=1 // pred_region
      %33 = vsyncadd [#allocation6], 0
      %s34 = sshll.u32 %s1, 4
      %s35 = int_to_ptr.hbm [resolvable:$true] %s34
      %s36 = sshll.u32 [#allocation5], 4
      %s37 = int_to_ptr.vmem [resolvable:$true] %s36
      %42 = dma.hbm_to_vmem [thread:$0]  %s35, 32, %s37, [#allocation6], 16, 16, 1
    $region9: #{tpu_custom_call.1} parent=1 // pred_fallthru
      _
    // Predicated region
    $region10: #{tpu_custom_call.1} parent=1 // pred_check
      _
    $region11: #{tpu_custom_call.1} parent=1 // pred_check_branch
      %44 = sbr.rel (0) target = $region13
    $region12: #{tpu_custom_call.1} parent=1 // pred_region
      %46 = vsyncadd [#allocation6], 0
      %s47 = sshll.u32 %s2, 4
      %s48 = int_to_ptr.hbm [resolvable:$true] %s47
      %s49 = sshll.u32 [#allocation7], 4
      %s50 = int_to_ptr.vmem [resolvable:$true] %s49
      %55 = dma.hbm_to_vmem [thread:$0]  %s48, 256, %s50, [#allocation6], 128, 128, 8
    $region13: #{tpu_custom_call.1} parent=1 // pred_fallthru
      _
    // Predicated region
    $region14: #{tpu_custom_call.1} parent=1 // pred_check
      _
    $region15: #{tpu_custom_call.1} parent=1 // pred_check_branch
      %57 = sbr.rel (0) target = $region17
    $region16: #{tpu_custom_call.1} parent=1 // pred_region
      _
    $region17: #{tpu_custom_call.1} parent=1 // pred_fallthru
      _
    // Predicated region
    $region18: #{tpu_custom_call.1} parent=1 // pred_check
      _
    $region19: #{tpu_custom_call.1} parent=1 // pred_check_branch
      %59 = sbr.rel (0) target = $region21
    $region20: #{tpu_custom_call.1} parent=1 // pred_region
      _
    $region21: #{tpu_custom_call.1} parent=1 // pred_fallthru
      _
    // Predicated region
    $region22: #{tpu_custom_call.1} parent=1 // pred_check
      _
    $region23: #{tpu_custom_call.1} parent=1 // pred_check_branch
      %61 = sbr.rel (0) target = $region25
    $region24: #{tpu_custom_call.1} parent=1 // pred_region
      _
    $region25: #{tpu_custom_call.1} parent=1 // pred_fallthru
      _
    // Predicated region
    $region26: #{tpu_custom_call.1} parent=1 // pred_check
      _
    $region27: #{tpu_custom_call.1} parent=1 // pred_check_branch
      %63 = sbr.rel (0) target = $region29
    $region28: #{tpu_custom_call.1} parent=1 // pred_region
      _
    $region29: #{tpu_custom_call.1} parent=1 // pred_fallthru
      _
    // Predicated region
    $region30: #{tpu_custom_call.1} parent=1 // pred_check
      _
    $region31: #{tpu_custom_call.1} parent=1 // pred_check_branch
      %65 = sbr.rel (0) target = $region33
    $region32: #{tpu_custom_call.1} parent=1 // pred_region
      %67 = vsyncadd [#allocation9], 0
      %s68 = sshll.u32 %s7, 4
      %s69 = int_to_ptr.hbm [resolvable:$true] %s68
      %s70 = sshll.u32 [#allocation8], 4
      %s71 = int_to_ptr.vmem [resolvable:$true] %s70
      %76 = dma.hbm_to_vmem [thread:$0]  %s69, 256, %s71, [#allocation9], 128, 128, 8
    $region33: #{tpu_custom_call.1} parent=1 // pred_fallthru
      _
    // Predicated region
    $region34: #{tpu_custom_call.1} parent=1 // pred_check
      _
    $region35: #{tpu_custom_call.1} parent=1 // pred_check_branch
      %78 = sbr.rel (0) target = $region37
    $region36: #{tpu_custom_call.1} parent=1 // pred_region
      %80 = dma.done [#allocation3], 256
    $region37: #{tpu_custom_call.1} parent=1 // pred_fallthru
      _
    // Predicated region
    $region38: #{tpu_custom_call.1} parent=1 // pred_check
      _
    $region39: #{tpu_custom_call.1} parent=1 // pred_check_branch
      %82 = sbr.rel (0) target = $region41
    $region40: #{tpu_custom_call.1} parent=1 // pred_region
      %84 = dma.done [#allocation6], 32
    $region41: #{tpu_custom_call.1} parent=1 // pred_fallthru
      _
    // Predicated region
    $region42: #{tpu_custom_call.1} parent=1 // pred_check
      _
    $region43: #{tpu_custom_call.1} parent=1 // pred_check_branch
      %86 = sbr.rel (0) target = $region45
    $region44: #{tpu_custom_call.1} parent=1 // pred_region
      %88 = dma.done [#allocation6], 256
    $region45: #{tpu_custom_call.1} parent=1 // pred_fallthru
      _
    // Predicated region
    $region46: #{tpu_custom_call.1} parent=1 // pred_check
      _
    $region47: #{tpu_custom_call.1} parent=1 // pred_check_branch
      %90 = sbr.rel (0) target = $region49
    $region48: #{tpu_custom_call.1} parent=1 // pred_region
      %92 = dma.done [#allocation9], 256
    $region49: #{tpu_custom_call.1} parent=1 // pred_fallthru
      _
    %v93 = vld [vmem:[#allocation8] sm:$0xff]
    %v94 = vld [vmem:[#allocation8 + $0x8] sm:$0x3]
    %v95 = vld [vmem:[#allocation5] sm:$0x1]
    %v96 = vld [vmem:[#allocation5 + $0x1] sm:$0x1]
    %v97 = vld [vmem:[#allocation2] sm:$0xff]
    %v98 = vld [vmem:[#allocation2 + $0x8] sm:$0xff]
    %vm99 = vcmask 261120
    %v100 = vsel %vm99, %v97, 0.0
    %101 = vadd.xlane.f32.xlu0 %v100
    %v102 = vpop.xlane.xlu0 %101
    %v103 = vsel %vm99, %v98, 0.0
    %104 = vadd.xlane.f32.xlu0 %v103
    %v105 = vpop.xlane.xlu0 %104
    %v106 = vrcp.pop 32.0
    %v107 = vmul.f32 32.0, %v106
    %v108 = vsub.f32 1.0, %v107
    %v109 = vmul.f32 %v106, %v108
    %v110 = vadd.f32 %v106, %v109
    %vm111 = vweird.f32 %v106
    %v112 = vsel %vm111, %v106, %v110
    %v113 = vmul.f32 %v102, %v112
    %v114 = vmul.f32 %v105, %v112
    %v115 = vsub.f32 %v97, %v113
    %v116 = vsub.f32 %v98, %v114
    %v117 = vmul.f32 %v115, %v115
    %v118 = vmul.f32 %v116, %v116
    %v119 = vsel %vm99, %v117, 0.0
    %120 = vadd.xlane.f32.xlu0 %v119
    %v121 = vpop.xlane.xlu0 %120
    %v122 = vsel %vm99, %v118, 0.0
    %123 = vadd.xlane.f32.xlu0 %v122
    %v124 = vpop.xlane.xlu0 %123
    %v125 = vmul.f32 %v121, %v112
    %v126 = vmul.f32 %v124, %v112
    %v127 = vadd.f32 %v125, 1e-05
    %v128 = vadd.f32 %v126, 1e-05
    %v129 = vrsqrt.pop %v127
    %v130 = vmul.f32 %v129, %v127
    %v131 = vmul.f32 %v130, %v129
    %v132 = vmul.f32 0.5, %v131
    %v133 = vsub.f32 1.5, %v132
    %v134 = vmul.f32 %v129, %v133
    %vm135 = vweird.f32 %v127
    %vm136 = vweird.f32 %v129
    %vm137 = vmor %vm135, %vm136
    %v138 = vsel %vm137, %v129, %v134
    %v139 = vrsqrt.pop %v128
    %v140 = vmul.f32 %v139, %v128
    %v141 = vmul.f32 %v140, %v139
    %v142 = vmul.f32 0.5, %v141
    %v143 = vsub.f32 1.5, %v142
    %v144 = vmul.f32 %v139, %v143
    %vm145 = vweird.f32 %v128
    %vm146 = vweird.f32 %v139
    %vm147 = vmor %vm145, %vm146
    %v148 = vsel %vm147, %v139, %v144
    %v149 = vmul.f32 %v115, %v138
    %v150 = vmul.f32 %v116, %v148
    %v151 = vperm.slane %v93, 0
    %v152 = vmul.f32 %v149, %v151
    %v153 = vmul.f32 %v150, %v151
    %v154 = vperm.slane %v93, 1
    %v155 = vadd.f32 %v152, %v154
    %v156 = vadd.f32 %v153, %v154
    %v157 = vld [vmem:[%s3] sm:$0xff]
    %v158 = vld [vmem:[%s3 + $0x8] sm:$0xff]
    %v159 = vld [vmem:[%s3 + $0x10] sm:$0xff]
    %v160 = vld [vmem:[%s3 + $0x18] sm:$0xff]
    %v161 = vperm.slane %v94, 1
    %v163 = vsel %vm99, %v155, 0
    %v166 = vsel %vm99, %v156, 0
    %168 = vmatpush.msra.mxu0 0.0
    %169 = vmatpush.msra.mxu0 0.0
    %170 = vmatpush.msra.mxu0 0.0
    %171 = vmatpush.msra.mxu0 0.0
    %172 = vmatpush.msra.mxu0 0.0
    %173 = vmatpush.msra.mxu0 0.0
    %174 = vmatpush.msra.mxu0 0.0
    %175 = vmatpush.msra.mxu0 0.0
    %176 = vmatpush.msra.mxu0 0.0
    %177 = vmatpush.msra.mxu0 0.0
    %178 = vmatpush.msra.mxu0 0.0
    %179 = vmatpush.msra.mxu0 0.0
    %180 = vmatpush.msra.mxu0 %v160
    %181 = vmatpush.msra.mxu0 %v159
    %182 = vmatpush.msra.mxu0 %v158
    %183 = vmatpush.msra.mxu0 %v157
    %184 = vmatmul.f32.gmra.mxu0 %v163
    %v185 = vpop.f32.mrf.mxu0
    %v186 = vadd.f32 %v161, %v185
    %187 = vmatmul.f32.gmra.mxu0 %v166
    %v188 = vpop.f32.mrf.mxu0
    %v189 = vadd.f32 %v161, %v188
    %190 = vdwg.mxu0
    %v193 = vperm.slane %v95, 0
    %v194 = vperm.slane %v96, 0
    %198 = vrot.lane.b32.xlu0 %v186, 112
    %v199 = vpop.permute.xlu0 %198
    %vm200 = vcmask 130048
    %v201 = vsel %vm200, %v186, 0
    %v203 = vsel %vm200, %v199, 0
    %205 = vmatpush.xpose.msra.mxu0 0.0
    %206 = vmatpush.xpose.msra.mxu0 0.0
    %207 = vmatpush.xpose.msra.mxu0 0.0
    %208 = vmatpush.xpose.msra.mxu0 0.0
    %209 = vmatpush.xpose.msra.mxu0 0.0
    %210 = vmatpush.xpose.msra.mxu0 0.0
    %211 = vmatpush.xpose.msra.mxu0 0.0
    %212 = vmatpush.xpose.msra.mxu0 0.0
    %213 = vmatpush.xpose.msra.mxu0 0.0
    %214 = vmatpush.xpose.msra.mxu0 0.0
    %215 = vmatpush.xpose.msra.mxu0 0.0
    %216 = vmatpush.xpose.msra.mxu0 0.0
    %217 = vmatpush.xpose.msra.mxu0 0.0
    %218 = vmatpush.xpose.msra.mxu0 0.0
    %219 = vmatpush.xpose.msra.mxu0 0.0
    %220 = vmatpush.xpose.msra.mxu0 %v203
    %221 = vmatmul.f32.gmra.mxu0 %v201
    %v222 = vpop.f32.mrf.mxu0
    %v223 = vadd.f32 %v193, %v222
    %224 = vdwg.mxu0
    %226 = vrot.lane.b32.xlu0 %v189, 112
    %v227 = vpop.permute.xlu0 %226
    %v228 = vsel %vm200, %v189, 0
    %v230 = vsel %vm200, %v227, 0
    %232 = vmatpush.xpose.msra.mxu0 0.0
    %233 = vmatpush.xpose.msra.mxu0 0.0
    %234 = vmatpush.xpose.msra.mxu0 0.0
    %235 = vmatpush.xpose.msra.mxu0 0.0
    %236 = vmatpush.xpose.msra.mxu0 0.0
    %237 = vmatpush.xpose.msra.mxu0 0.0
    %238 = vmatpush.xpose.msra.mxu0 0.0
    %239 = vmatpush.xpose.msra.mxu0 0.0
    %240 = vmatpush.xpose.msra.mxu0 0.0
    %241 = vmatpush.xpose.msra.mxu0 0.0
    %242 = vmatpush.xpose.msra.mxu0 0.0
    %243 = vmatpush.xpose.msra.mxu0 0.0
    %244 = vmatpush.xpose.msra.mxu0 0.0
    %245 = vmatpush.xpose.msra.mxu0 0.0
    %246 = vmatpush.xpose.msra.mxu0 0.0
    %247 = vmatpush.xpose.msra.mxu0 %v230
    %248 = vmatmul.f32.gmra.mxu0 %v228
    %v249 = vpop.f32.mrf.mxu0
    %v250 = vadd.f32 %v194, %v249
    %251 = vdwg.mxu0
    %vm252 = vcmask 64512
    %v253 = vsel %vm252, %v223, -inf
    %254 = vmax.xlane.f32.xlu0 %v253
    %v255 = vpop.xlane.xlu0 %254
    %v256 = vsel %vm252, %v250, -inf
    %257 = vmax.xlane.f32.xlu0 %v256
    %v258 = vpop.xlane.xlu0 %257
    %v259 = vsub.f32 %v223, %v255
    %v260 = vsub.f32 %v250, %v258
    %v261 = vmul.f32 %v259, 1.442695
    %v262 = vpow.pop %v261
    %v263 = vmul.f32 %v260, 1.442695
    %v264 = vpow.pop %v263
    %v265 = vsel %vm252, %v262, 0.0
    %266 = vadd.xlane.f32.xlu0 %v265
    %v267 = vpop.xlane.xlu0 %266
    %v268 = vsel %vm252, %v264, 0.0
    %269 = vadd.xlane.f32.xlu0 %v268
    %v270 = vpop.xlane.xlu0 %269
    %v271 = vrcp.pop %v267
    %v272 = vrcp.pop %v270
    %v273 = vmul.f32 %v262, %v271
    %v274 = vmul.f32 %v264, %v272
    %275 = vrot.lane.b32.xlu0 %v186, 96
    %v276 = vpop.permute.xlu0 %275
    %v279 = vsel %vm252, %v273, 0
    %281 = vmatpush.msra.mxu0 0.0
    %282 = vmatpush.msra.mxu0 0.0
    %283 = vmatpush.msra.mxu0 0.0
    %284 = vmatpush.msra.mxu0 0.0
    %285 = vmatpush.msra.mxu0 0.0
    %286 = vmatpush.msra.mxu0 0.0
    %287 = vmatpush.msra.mxu0 0.0
    %288 = vmatpush.msra.mxu0 0.0
    %289 = vmatpush.msra.mxu0 0.0
    %290 = vmatpush.msra.mxu0 0.0
    %291 = vmatpush.msra.mxu0 0.0
    %292 = vmatpush.msra.mxu0 0.0
    %293 = vmatpush.msra.mxu0 0.0
    %294 = vmatpush.msra.mxu0 0.0
    %295 = vmatpush.msra.mxu0 0.0
    %296 = vmatpush.msra.mxu0 %v276
    %297 = vmatmul.f32.gmra.mxu0 %v279
    %v298 = vpop.f32.mrf.mxu0
    %v299 = vadd.f32 0.0, %v298
    %300 = vdwg.mxu0
    %301 = vrot.lane.b32.xlu0 %v189, 96
    %v302 = vpop.permute.xlu0 %301
    %v305 = vsel %vm252, %v274, 0
    %307 = vmatpush.msra.mxu0 0.0
    %308 = vmatpush.msra.mxu0 0.0
    %309 = vmatpush.msra.mxu0 0.0
    %310 = vmatpush.msra.mxu0 0.0
    %311 = vmatpush.msra.mxu0 0.0
    %312 = vmatpush.msra.mxu0 0.0
    %313 = vmatpush.msra.mxu0 0.0
    %314 = vmatpush.msra.mxu0 0.0
    %315 = vmatpush.msra.mxu0 0.0
    %316 = vmatpush.msra.mxu0 0.0
    %317 = vmatpush.msra.mxu0 0.0
    %318 = vmatpush.msra.mxu0 0.0
    %319 = vmatpush.msra.mxu0 0.0
    %320 = vmatpush.msra.mxu0 0.0
    %321 = vmatpush.msra.mxu0 0.0
    %322 = vmatpush.msra.mxu0 %v302
    %323 = vmatmul.f32.gmra.mxu0 %v305
    %v324 = vpop.f32.mrf.mxu0
    %v325 = vadd.f32 0.0, %v324
    %326 = vdwg.mxu0
    %v327 = vld [vmem:[%s4] sm:$0xff]
    %v328 = vld [vmem:[%s4 + $0x8] sm:$0xff]
    %v330 = vsel %vm200, %v299, 0
    %v333 = vsel %vm200, %v325, 0
    %335 = vmatpush.msra.mxu0 0.0
    %336 = vmatpush.msra.mxu0 0.0
    %337 = vmatpush.msra.mxu0 0.0
    %338 = vmatpush.msra.mxu0 0.0
    %339 = vmatpush.msra.mxu0 0.0
    %340 = vmatpush.msra.mxu0 0.0
    %341 = vmatpush.msra.mxu0 0.0
    %342 = vmatpush.msra.mxu0 0.0
    %343 = vmatpush.msra.mxu0 0.0
    %344 = vmatpush.msra.mxu0 0.0
    %345 = vmatpush.msra.mxu0 0.0
    %346 = vmatpush.msra.mxu0 0.0
    %347 = vmatpush.msra.mxu0 0.0
    %348 = vmatpush.msra.mxu0 0.0
    %349 = vmatpush.msra.mxu0 %v328
    %350 = vmatpush.msra.mxu0 %v327
    %351 = vmatmul.f32.gmra.mxu0 %v330
    %v352 = vpop.f32.mrf.mxu0
    %v353 = vadd.f32 0.0, %v352
    %354 = vmatmul.f32.gmra.mxu0 %v333
    %v355 = vpop.f32.mrf.mxu0
    %v356 = vadd.f32 0.0, %v355
    %357 = vdwg.mxu0
    %v358 = vperm.slane %v93, 6
    %v359 = vadd.f32 %v358, %v353
    %v360 = vadd.f32 %v358, %v356
    %361 = vrot.lane.b32.xlu0 %v186, 80
    %v362 = vpop.permute.xlu0 %361
    %363 = vrot.lane.b32.xlu0 %v186, 64
    %v364 = vpop.permute.xlu0 %363
    %v365 = vsel %vm200, %v362, 0
    %v367 = vsel %vm200, %v364, 0
    %369 = vmatpush.xpose.msra.mxu0 0.0
    %370 = vmatpush.xpose.msra.mxu0 0.0
    %371 = vmatpush.xpose.msra.mxu0 0.0
    %372 = vmatpush.xpose.msra.mxu0 0.0
    %373 = vmatpush.xpose.msra.mxu0 0.0
    %374 = vmatpush.xpose.msra.mxu0 0.0
    %375 = vmatpush.xpose.msra.mxu0 0.0
    %376 = vmatpush.xpose.msra.mxu0 0.0
    %377 = vmatpush.xpose.msra.mxu0 0.0
    %378 = vmatpush.xpose.msra.mxu0 0.0
    %379 = vmatpush.xpose.msra.mxu0 0.0
    %380 = vmatpush.xpose.msra.mxu0 0.0
    %381 = vmatpush.xpose.msra.mxu0 0.0
    %382 = vmatpush.xpose.msra.mxu0 0.0
    %383 = vmatpush.xpose.msra.mxu0 0.0
    %384 = vmatpush.xpose.msra.mxu0 %v367
    %385 = vmatmul.f32.gmra.mxu0 %v365
    %v386 = vpop.f32.mrf.mxu0
    %v387 = vadd.f32 %v193, %v386
    %388 = vdwg.mxu0
    %389 = vrot.lane.b32.xlu0 %v189, 80
    %v390 = vpop.permute.xlu0 %389
    %391 = vrot.lane.b32.xlu0 %v189, 64
    %v392 = vpop.permute.xlu0 %391
    %v393 = vsel %vm200, %v390, 0
    %v395 = vsel %vm200, %v392, 0
    %397 = vmatpush.xpose.msra.mxu0 0.0
    %398 = vmatpush.xpose.msra.mxu0 0.0
    %399 = vmatpush.xpose.msra.mxu0 0.0
    %400 = vmatpush.xpose.msra.mxu0 0.0
    %401 = vmatpush.xpose.msra.mxu0 0.0
    %402 = vmatpush.xpose.msra.mxu0 0.0
    %403 = vmatpush.xpose.msra.mxu0 0.0
    %404 = vmatpush.xpose.msra.mxu0 0.0
    %405 = vmatpush.xpose.msra.mxu0 0.0
    %406 = vmatpush.xpose.msra.mxu0 0.0
    %407 = vmatpush.xpose.msra.mxu0 0.0
    %408 = vmatpush.xpose.msra.mxu0 0.0
    %409 = vmatpush.xpose.msra.mxu0 0.0
    %410 = vmatpush.xpose.msra.mxu0 0.0
    %411 = vmatpush.xpose.msra.mxu0 0.0
    %412 = vmatpush.xpose.msra.mxu0 %v395
    %413 = vmatmul.f32.gmra.mxu0 %v393
    %v414 = vpop.f32.mrf.mxu0
    %v415 = vadd.f32 %v194, %v414
    %416 = vdwg.mxu0
    %v417 = vsel %vm252, %v387, -inf
    %418 = vmax.xlane.f32.xlu0 %v417
    %v419 = vpop.xlane.xlu0 %418
    %v420 = vsel %vm252, %v415, -inf
    %421 = vmax.xlane.f32.xlu0 %v420
    %v422 = vpop.xlane.xlu0 %421
    %v423 = vsub.f32 %v387, %v419
    %v424 = vsub.f32 %v415, %v422
    %v425 = vmul.f32 %v423, 1.442695
    %v426 = vpow.pop %v425
    %v427 = vmul.f32 %v424, 1.442695
    %v428 = vpow.pop %v427
    %v429 = vsel %vm252, %v426, 0.0
    %430 = vadd.xlane.f32.xlu0 %v429
    %v431 = vpop.xlane.xlu0 %430
    %v432 = vsel %vm252, %v428, 0.0
    %433 = vadd.xlane.f32.xlu0 %v432
    %v434 = vpop.xlane.xlu0 %433
    %v435 = vrcp.pop %v431
    %v436 = vrcp.pop %v434
    %v437 = vmul.f32 %v426, %v435
    %v438 = vmul.f32 %v428, %v436
    %439 = vrot.lane.b32.xlu0 %v186, 48
    %v440 = vpop.permute.xlu0 %439
    %v443 = vsel %vm252, %v437, 0
    %445 = vmatpush.msra.mxu0 0.0
    %446 = vmatpush.msra.mxu0 0.0
    %447 = vmatpush.msra.mxu0 0.0
    %448 = vmatpush.msra.mxu0 0.0
    %449 = vmatpush.msra.mxu0 0.0
    %450 = vmatpush.msra.mxu0 0.0
    %451 = vmatpush.msra.mxu0 0.0
    %452 = vmatpush.msra.mxu0 0.0
    %453 = vmatpush.msra.mxu0 0.0
    %454 = vmatpush.msra.mxu0 0.0
    %455 = vmatpush.msra.mxu0 0.0
    %456 = vmatpush.msra.mxu0 0.0
    %457 = vmatpush.msra.mxu0 0.0
    %458 = vmatpush.msra.mxu0 0.0
    %459 = vmatpush.msra.mxu0 0.0
    %460 = vmatpush.msra.mxu0 %v440
    %461 = vmatmul.f32.gmra.mxu0 %v443
    %v462 = vpop.f32.mrf.mxu0
    %v463 = vadd.f32 0.0, %v462
    %464 = vdwg.mxu0
    %465 = vrot.lane.b32.xlu0 %v189, 48
    %v466 = vpop.permute.xlu0 %465
    %v469 = vsel %vm252, %v438, 0
    %471 = vmatpush.msra.mxu0 0.0
    %472 = vmatpush.msra.mxu0 0.0
    %473 = vmatpush.msra.mxu0 0.0
    %474 = vmatpush.msra.mxu0 0.0
    %475 = vmatpush.msra.mxu0 0.0
    %476 = vmatpush.msra.mxu0 0.0
    %477 = vmatpush.msra.mxu0 0.0
    %478 = vmatpush.msra.mxu0 0.0
    %479 = vmatpush.msra.mxu0 0.0
    %480 = vmatpush.msra.mxu0 0.0
    %481 = vmatpush.msra.mxu0 0.0
    %482 = vmatpush.msra.mxu0 0.0
    %483 = vmatpush.msra.mxu0 0.0
    %484 = vmatpush.msra.mxu0 0.0
    %485 = vmatpush.msra.mxu0 0.0
    %486 = vmatpush.msra.mxu0 %v466
    %487 = vmatmul.f32.gmra.mxu0 %v469
    %v488 = vpop.f32.mrf.mxu0
    %v489 = vadd.f32 0.0, %v488
    %490 = vdwg.mxu0
    %v491 = vld [vmem:[%s4 + $0x10] sm:$0xff]
    %v492 = vld [vmem:[%s4 + $0x18] sm:$0xff]
    %v494 = vsel %vm200, %v463, 0
    %v497 = vsel %vm200, %v489, 0
    %499 = vmatpush.msra.mxu0 0.0
    %500 = vmatpush.msra.mxu0 0.0
    %501 = vmatpush.msra.mxu0 0.0
    %502 = vmatpush.msra.mxu0 0.0
    %503 = vmatpush.msra.mxu0 0.0
    %504 = vmatpush.msra.mxu0 0.0
    %505 = vmatpush.msra.mxu0 0.0
    %506 = vmatpush.msra.mxu0 0.0
    %507 = vmatpush.msra.mxu0 0.0
    %508 = vmatpush.msra.mxu0 0.0
    %509 = vmatpush.msra.mxu0 0.0
    %510 = vmatpush.msra.mxu0 0.0
    %511 = vmatpush.msra.mxu0 0.0
    %512 = vmatpush.msra.mxu0 0.0
    %513 = vmatpush.msra.mxu0 %v492
    %514 = vmatpush.msra.mxu0 %v491
    %515 = vmatmul.f32.gmra.mxu0 %v494
    %v516 = vpop.f32.mrf.mxu0
    %v517 = vadd.f32 0.0, %v516
    %518 = vmatmul.f32.gmra.mxu0 %v497
    %v519 = vpop.f32.mrf.mxu0
    %v520 = vadd.f32 0.0, %v519
    %521 = vdwg.mxu0
    %v522 = vadd.f32 %v359, %v517
    %v523 = vadd.f32 %v360, %v520
    %v524 = vadd.f32 %v522, %v97
    %v525 = vadd.f32 %v523, %v98
    %v526 = vsel %vm99, %v524, 0.0
    %527 = vadd.xlane.f32.xlu0 %v526
    %v528 = vpop.xlane.xlu0 %527
    %v529 = vsel %vm99, %v525, 0.0
    %530 = vadd.xlane.f32.xlu0 %v529
    %v531 = vpop.xlane.xlu0 %530
    %v532 = vmul.f32 %v528, %v112
    %v533 = vmul.f32 %v531, %v112
    %v534 = vsub.f32 %v524, %v532
    %v535 = vsub.f32 %v525, %v533
    %v536 = vmul.f32 %v534, %v534
    %v537 = vmul.f32 %v535, %v535
    %v538 = vsel %vm99, %v536, 0.0
    %539 = vadd.xlane.f32.xlu0 %v538
    %v540 = vpop.xlane.xlu0 %539
    %v541 = vsel %vm99, %v537, 0.0
    %542 = vadd.xlane.f32.xlu0 %v541
    %v543 = vpop.xlane.xlu0 %542
    %v544 = vmul.f32 %v540, %v112
    %v545 = vmul.f32 %v543, %v112
    %v546 = vadd.f32 %v544, 1e-05
    %v547 = vadd.f32 %v545, 1e-05
    %v548 = vrsqrt.pop %v546
    %v549 = vmul.f32 %v548, %v546
    %v550 = vmul.f32 %v549, %v548
    %v551 = vmul.f32 0.5, %v550
    %v552 = vsub.f32 1.5, %v551
    %v553 = vmul.f32 %v548, %v552
    %vm554 = vweird.f32 %v546
    %vm555 = vweird.f32 %v548
    %vm556 = vmor %vm554, %vm555
    %v557 = vsel %vm556, %v548, %v553
    %v558 = vrsqrt.pop %v547
    %v559 = vmul.f32 %v558, %v547
    %v560 = vmul.f32 %v559, %v558
    %v561 = vmul.f32 0.5, %v560
    %v562 = vsub.f32 1.5, %v561
    %v563 = vmul.f32 %v558, %v562
    %vm564 = vweird.f32 %v547
    %vm565 = vweird.f32 %v558
    %vm566 = vmor %vm564, %vm565
    %v567 = vsel %vm566, %v558, %v563
    %v568 = vmul.f32 %v534, %v557
    %v569 = vmul.f32 %v535, %v567
    %v570 = vperm.slane %v93, 2
    %v571 = vmul.f32 %v568, %v570
    %v572 = vmul.f32 %v569, %v570
    %v573 = vperm.slane %v93, 3
    %v574 = vadd.f32 %v571, %v573
    %v575 = vadd.f32 %v572, %v573
    %v576 = vld [vmem:[%s5] sm:$0xff]
    %v577 = vld [vmem:[%s5 + $0x8] sm:$0xff]
    %v578 = vld [vmem:[%s5 + $0x10] sm:$0xff]
    %v579 = vld [vmem:[%s5 + $0x18] sm:$0xff]
    %v580 = vperm.slane %v94, 0
    %v582 = vsel %vm99, %v574, 0
    %v585 = vsel %vm99, %v575, 0
    %587 = vmatpush.msra.mxu0 0.0
    %588 = vmatpush.msra.mxu0 0.0
    %589 = vmatpush.msra.mxu0 0.0
    %590 = vmatpush.msra.mxu0 0.0
    %591 = vmatpush.msra.mxu0 0.0
    %592 = vmatpush.msra.mxu0 0.0
    %593 = vmatpush.msra.mxu0 0.0
    %594 = vmatpush.msra.mxu0 0.0
    %595 = vmatpush.msra.mxu0 0.0
    %596 = vmatpush.msra.mxu0 0.0
    %597 = vmatpush.msra.mxu0 0.0
    %598 = vmatpush.msra.mxu0 0.0
    %599 = vmatpush.msra.mxu0 %v579
    %600 = vmatpush.msra.mxu0 %v578
    %601 = vmatpush.msra.mxu0 %v577
    %602 = vmatpush.msra.mxu0 %v576
    %603 = vmatmul.f32.gmra.mxu0 %v582
    %v604 = vpop.f32.mrf.mxu0
    %v605 = vadd.f32 %v580, %v604
    %606 = vmatmul.f32.gmra.mxu0 %v585
    %v607 = vpop.f32.mrf.mxu0
    %v608 = vadd.f32 %v580, %v607
    %609 = vdwg.mxu0
    %v610 = vmax.f32 %v605, 0.0
    %v611 = vmax.f32 %v608, 0.0
    %v612 = vld [vmem:[%s6] sm:$0xff]
    %v613 = vld [vmem:[%s6 + $0x8] sm:$0xff]
    %v614 = vld [vmem:[%s6 + $0x10] sm:$0xff]
    %v615 = vld [vmem:[%s6 + $0x18] sm:$0xff]
    %v616 = vld [vmem:[%s6 + $0x20] sm:$0xff]
    %v617 = vld [vmem:[%s6 + $0x28] sm:$0xff]
    %v618 = vld [vmem:[%s6 + $0x30] sm:$0xff]
    %v619 = vld [vmem:[%s6 + $0x38] sm:$0xff]
    %v620 = vperm.slane %v93, 7
    %vm621 = vcmask 523264
    %v623 = vsel %vm621, %v610, 0
    %v626 = vsel %vm621, %v611, 0
    %628 = vmatpush.msra.mxu0 0.0
    %629 = vmatpush.msra.mxu0 0.0
    %630 = vmatpush.msra.mxu0 0.0
    %631 = vmatpush.msra.mxu0 0.0
    %632 = vmatpush.msra.mxu0 0.0
    %633 = vmatpush.msra.mxu0 0.0
    %634 = vmatpush.msra.mxu0 0.0
    %635 = vmatpush.msra.mxu0 0.0
    %636 = vmatpush.msra.mxu0 %v619
    %637 = vmatpush.msra.mxu0 %v618
    %638 = vmatpush.msra.mxu0 %v617
    %639 = vmatpush.msra.mxu0 %v616
    %640 = vmatpush.msra.mxu0 %v615
    %641 = vmatpush.msra.mxu0 %v614
    %642 = vmatpush.msra.mxu0 %v613
    %643 = vmatpush.msra.mxu0 %v612
    %644 = vmatmul.f32.gmra.mxu0 %v623
    %v645 = vpop.f32.mrf.mxu0
    %v646 = vadd.f32 %v620, %v645
    %647 = vmatmul.f32.gmra.mxu0 %v626
    %v648 = vpop.f32.mrf.mxu0
    %v649 = vadd.f32 %v620, %v648
    %650 = vdwg.mxu0
    %v651 = vadd.f32 %v646, %v524
    %v652 = vadd.f32 %v649, %v525
    %v653 = vsel %vm99, %v651, 0.0
    %654 = vadd.xlane.f32.xlu0 %v653
    %v655 = vpop.xlane.xlu0 %654
    %v656 = vsel %vm99, %v652, 0.0
    %657 = vadd.xlane.f32.xlu0 %v656
    %v658 = vpop.xlane.xlu0 %657
    %v659 = vmul.f32 %v655, %v112
    %v660 = vmul.f32 %v658, %v112
    %v661 = vsub.f32 %v651, %v659
    %v662 = vsub.f32 %v652, %v660
    %v663 = vmul.f32 %v661, %v661
    %v664 = vmul.f32 %v662, %v662
    %v665 = vsel %vm99, %v663, 0.0
    %666 = vadd.xlane.f32.xlu0 %v665
    %v667 = vpop.xlane.xlu0 %666
    %v668 = vsel %vm99, %v664, 0.0
    %669 = vadd.xlane.f32.xlu0 %v668
    %v670 = vpop.xlane.xlu0 %669
    %v671 = vmul.f32 %v667, %v112
    %v672 = vmul.f32 %v670, %v112
    %v673 = vadd.f32 %v671, 1e-05
    %v674 = vadd.f32 %v672, 1e-05
    %v675 = vrsqrt.pop %v673
    %v676 = vmul.f32 %v675, %v673
    %v677 = vmul.f32 %v676, %v675
    %v678 = vmul.f32 0.5, %v677
    %v679 = vsub.f32 1.5, %v678
    %v680 = vmul.f32 %v675, %v679
    %vm681 = vweird.f32 %v673
    %vm682 = vweird.f32 %v675
    %vm683 = vmor %vm681, %vm682
    %v684 = vsel %vm683, %v675, %v680
    %v685 = vrsqrt.pop %v674
    %v686 = vmul.f32 %v685, %v674
    %v687 = vmul.f32 %v686, %v685
    %v688 = vmul.f32 0.5, %v687
    %v689 = vsub.f32 1.5, %v688
    %v690 = vmul.f32 %v685, %v689
    %vm691 = vweird.f32 %v674
    %vm692 = vweird.f32 %v685
    %vm693 = vmor %vm691, %vm692
    %v694 = vsel %vm693, %v685, %v690
    %v695 = vmul.f32 %v661, %v684
    %v696 = vmul.f32 %v662, %v694
    %v697 = vmul.f32 %v695, %v151
    %v698 = vmul.f32 %v696, %v151
    %v699 = vadd.f32 %v697, %v154
    %v700 = vadd.f32 %v698, %v154
    %v701 = vld [vmem:[%s3] sm:$0xff]
    %v702 = vld [vmem:[%s3 + $0x8] sm:$0xff]
    %v703 = vld [vmem:[%s3 + $0x10] sm:$0xff]
    %v704 = vld [vmem:[%s3 + $0x18] sm:$0xff]
    %v706 = vsel %vm99, %v699, 0
    %v709 = vsel %vm99, %v700, 0
    %711 = vmatpush.msra.mxu0 0.0
    %712 = vmatpush.msra.mxu0 0.0
    %713 = vmatpush.msra.mxu0 0.0
    %714 = vmatpush.msra.mxu0 0.0
    %715 = vmatpush.msra.mxu0 0.0
    %716 = vmatpush.msra.mxu0 0.0
    %717 = vmatpush.msra.mxu0 0.0
    %718 = vmatpush.msra.mxu0 0.0
    %719 = vmatpush.msra.mxu0 0.0
    %720 = vmatpush.msra.mxu0 0.0
    %721 = vmatpush.msra.mxu0 0.0
    %722 = vmatpush.msra.mxu0 0.0
    %723 = vmatpush.msra.mxu0 %v704
    %724 = vmatpush.msra.mxu0 %v703
    %725 = vmatpush.msra.mxu0 %v702
    %726 = vmatpush.msra.mxu0 %v701
    %727 = vmatmul.f32.gmra.mxu0 %v706
    %v728 = vpop.f32.mrf.mxu0
    %v729 = vadd.f32 %v161, %v728
    %730 = vmatmul.f32.gmra.mxu0 %v709
    %v731 = vpop.f32.mrf.mxu0
    %v732 = vadd.f32 %v161, %v731
    %733 = vdwg.mxu0
    %735 = vrot.lane.b32.xlu0 %v729, 112
    %v736 = vpop.permute.xlu0 %735
    %v737 = vsel %vm200, %v729, 0
    %v739 = vsel %vm200, %v736, 0
    %741 = vmatpush.xpose.msra.mxu0 0.0
    %742 = vmatpush.xpose.msra.mxu0 0.0
    %743 = vmatpush.xpose.msra.mxu0 0.0
    %744 = vmatpush.xpose.msra.mxu0 0.0
    %745 = vmatpush.xpose.msra.mxu0 0.0
    %746 = vmatpush.xpose.msra.mxu0 0.0
    %747 = vmatpush.xpose.msra.mxu0 0.0
    %748 = vmatpush.xpose.msra.mxu0 0.0
    %749 = vmatpush.xpose.msra.mxu0 0.0
    %750 = vmatpush.xpose.msra.mxu0 0.0
    %751 = vmatpush.xpose.msra.mxu0 0.0
    %752 = vmatpush.xpose.msra.mxu0 0.0
    %753 = vmatpush.xpose.msra.mxu0 0.0
    %754 = vmatpush.xpose.msra.mxu0 0.0
    %755 = vmatpush.xpose.msra.mxu0 0.0
    %756 = vmatpush.xpose.msra.mxu0 %v739
    %757 = vmatmul.f32.gmra.mxu0 %v737
    %v758 = vpop.f32.mrf.mxu0
    %v759 = vadd.f32 %v193, %v758
    %760 = vdwg.mxu0
    %762 = vrot.lane.b32.xlu0 %v732, 112
    %v763 = vpop.permute.xlu0 %762
    %v764 = vsel %vm200, %v732, 0
    %v766 = vsel %vm200, %v763, 0
    %768 = vmatpush.xpose.msra.mxu0 0.0
    %769 = vmatpush.xpose.msra.mxu0 0.0
    %770 = vmatpush.xpose.msra.mxu0 0.0
    %771 = vmatpush.xpose.msra.mxu0 0.0
    %772 = vmatpush.xpose.msra.mxu0 0.0
    %773 = vmatpush.xpose.msra.mxu0 0.0
    %774 = vmatpush.xpose.msra.mxu0 0.0
    %775 = vmatpush.xpose.msra.mxu0 0.0
    %776 = vmatpush.xpose.msra.mxu0 0.0
    %777 = vmatpush.xpose.msra.mxu0 0.0
    %778 = vmatpush.xpose.msra.mxu0 0.0
    %779 = vmatpush.xpose.msra.mxu0 0.0
    %780 = vmatpush.xpose.msra.mxu0 0.0
    %781 = vmatpush.xpose.msra.mxu0 0.0
    %782 = vmatpush.xpose.msra.mxu0 0.0
    %783 = vmatpush.xpose.msra.mxu0 %v766
    %784 = vmatmul.f32.gmra.mxu0 %v764
    %v785 = vpop.f32.mrf.mxu0
    %v786 = vadd.f32 %v194, %v785
    %787 = vdwg.mxu0
    %v788 = vsel %vm252, %v759, -inf
    %789 = vmax.xlane.f32.xlu0 %v788
    %v790 = vpop.xlane.xlu0 %789
    %v791 = vsel %vm252, %v786, -inf
    %792 = vmax.xlane.f32.xlu0 %v791
    %v793 = vpop.xlane.xlu0 %792
    %v794 = vsub.f32 %v759, %v790
    %v795 = vsub.f32 %v786, %v793
    %v796 = vmul.f32 %v794, 1.442695
    %v797 = vpow.pop %v796
    %v798 = vmul.f32 %v795, 1.442695
    %v799 = vpow.pop %v798
    %v800 = vsel %vm252, %v797, 0.0
    %801 = vadd.xlane.f32.xlu0 %v800
    %v802 = vpop.xlane.xlu0 %801
    %v803 = vsel %vm252, %v799, 0.0
    %804 = vadd.xlane.f32.xlu0 %v803
    %v805 = vpop.xlane.xlu0 %804
    %v806 = vrcp.pop %v802
    %v807 = vrcp.pop %v805
    %v808 = vmul.f32 %v797, %v806
    %v809 = vmul.f32 %v799, %v807
    %810 = vrot.lane.b32.xlu0 %v729, 96
    %v811 = vpop.permute.xlu0 %810
    %v814 = vsel %vm252, %v808, 0
    %816 = vmatpush.msra.mxu0 0.0
    %817 = vmatpush.msra.mxu0 0.0
    %818 = vmatpush.msra.mxu0 0.0
    %819 = vmatpush.msra.mxu0 0.0
    %820 = vmatpush.msra.mxu0 0.0
    %821 = vmatpush.msra.mxu0 0.0
    %822 = vmatpush.msra.mxu0 0.0
    %823 = vmatpush.msra.mxu0 0.0
    %824 = vmatpush.msra.mxu0 0.0
    %825 = vmatpush.msra.mxu0 0.0
    %826 = vmatpush.msra.mxu0 0.0
    %827 = vmatpush.msra.mxu0 0.0
    %828 = vmatpush.msra.mxu0 0.0
    %829 = vmatpush.msra.mxu0 0.0
    %830 = vmatpush.msra.mxu0 0.0
    %831 = vmatpush.msra.mxu0 %v811
    %832 = vmatmul.f32.gmra.mxu0 %v814
    %v833 = vpop.f32.mrf.mxu0
    %v834 = vadd.f32 0.0, %v833
    %835 = vdwg.mxu0
    %836 = vrot.lane.b32.xlu0 %v732, 96
    %v837 = vpop.permute.xlu0 %836
    %v840 = vsel %vm252, %v809, 0
    %842 = vmatpush.msra.mxu0 0.0
    %843 = vmatpush.msra.mxu0 0.0
    %844 = vmatpush.msra.mxu0 0.0
    %845 = vmatpush.msra.mxu0 0.0
    %846 = vmatpush.msra.mxu0 0.0
    %847 = vmatpush.msra.mxu0 0.0
    %848 = vmatpush.msra.mxu0 0.0
    %849 = vmatpush.msra.mxu0 0.0
    %850 = vmatpush.msra.mxu0 0.0
    %851 = vmatpush.msra.mxu0 0.0
    %852 = vmatpush.msra.mxu0 0.0
    %853 = vmatpush.msra.mxu0 0.0
    %854 = vmatpush.msra.mxu0 0.0
    %855 = vmatpush.msra.mxu0 0.0
    %856 = vmatpush.msra.mxu0 0.0
    %857 = vmatpush.msra.mxu0 %v837
    %858 = vmatmul.f32.gmra.mxu0 %v840
    %v859 = vpop.f32.mrf.mxu0
    %v860 = vadd.f32 0.0, %v859
    %861 = vdwg.mxu0
    %v862 = vld [vmem:[%s4] sm:$0xff]
    %v863 = vld [vmem:[%s4 + $0x8] sm:$0xff]
    %v865 = vsel %vm200, %v834, 0
    %v868 = vsel %vm200, %v860, 0
    %870 = vmatpush.msra.mxu0 0.0
    %871 = vmatpush.msra.mxu0 0.0
    %872 = vmatpush.msra.mxu0 0.0
    %873 = vmatpush.msra.mxu0 0.0
    %874 = vmatpush.msra.mxu0 0.0
    %875 = vmatpush.msra.mxu0 0.0
    %876 = vmatpush.msra.mxu0 0.0
    %877 = vmatpush.msra.mxu0 0.0
    %878 = vmatpush.msra.mxu0 0.0
    %879 = vmatpush.msra.mxu0 0.0
    %880 = vmatpush.msra.mxu0 0.0
    %881 = vmatpush.msra.mxu0 0.0
    %882 = vmatpush.msra.mxu0 0.0
    %883 = vmatpush.msra.mxu0 0.0
    %884 = vmatpush.msra.mxu0 %v863
    %885 = vmatpush.msra.mxu0 %v862
    %886 = vmatmul.f32.gmra.mxu0 %v865
    %v887 = vpop.f32.mrf.mxu0
    %v888 = vadd.f32 0.0, %v887
    %889 = vmatmul.f32.gmra.mxu0 %v868
    %v890 = vpop.f32.mrf.mxu0
    %v891 = vadd.f32 0.0, %v890
    %892 = vdwg.mxu0
    %v893 = vadd.f32 %v358, %v888
    %v894 = vadd.f32 %v358, %v891
    %895 = vrot.lane.b32.xlu0 %v729, 80
    %v896 = vpop.permute.xlu0 %895
    %897 = vrot.lane.b32.xlu0 %v729, 64
    %v898 = vpop.permute.xlu0 %897
    %v899 = vsel %vm200, %v896, 0
    %v901 = vsel %vm200, %v898, 0
    %903 = vmatpush.xpose.msra.mxu0 0.0
    %904 = vmatpush.xpose.msra.mxu0 0.0
    %905 = vmatpush.xpose.msra.mxu0 0.0
    %906 = vmatpush.xpose.msra.mxu0 0.0
    %907 = vmatpush.xpose.msra.mxu0 0.0
    %908 = vmatpush.xpose.msra.mxu0 0.0
    %909 = vmatpush.xpose.msra.mxu0 0.0
    %910 = vmatpush.xpose.msra.mxu0 0.0
    %911 = vmatpush.xpose.msra.mxu0 0.0
    %912 = vmatpush.xpose.msra.mxu0 0.0
    %913 = vmatpush.xpose.msra.mxu0 0.0
    %914 = vmatpush.xpose.msra.mxu0 0.0
    %915 = vmatpush.xpose.msra.mxu0 0.0
    %916 = vmatpush.xpose.msra.mxu0 0.0
    %917 = vmatpush.xpose.msra.mxu0 0.0
    %918 = vmatpush.xpose.msra.mxu0 %v901
    %919 = vmatmul.f32.gmra.mxu0 %v899
    %v920 = vpop.f32.mrf.mxu0
    %v921 = vadd.f32 %v193, %v920
    %922 = vdwg.mxu0
    %923 = vrot.lane.b32.xlu0 %v732, 80
    %v924 = vpop.permute.xlu0 %923
    %925 = vrot.lane.b32.xlu0 %v732, 64
    %v926 = vpop.permute.xlu0 %925
    %v927 = vsel %vm200, %v924, 0
    %v929 = vsel %vm200, %v926, 0
    %931 = vmatpush.xpose.msra.mxu0 0.0
    %932 = vmatpush.xpose.msra.mxu0 0.0
    %933 = vmatpush.xpose.msra.mxu0 0.0
    %934 = vmatpush.xpose.msra.mxu0 0.0
    %935 = vmatpush.xpose.msra.mxu0 0.0
    %936 = vmatpush.xpose.msra.mxu0 0.0
    %937 = vmatpush.xpose.msra.mxu0 0.0
    %938 = vmatpush.xpose.msra.mxu0 0.0
    %939 = vmatpush.xpose.msra.mxu0 0.0
    %940 = vmatpush.xpose.msra.mxu0 0.0
    %941 = vmatpush.xpose.msra.mxu0 0.0
    %942 = vmatpush.xpose.msra.mxu0 0.0
    %943 = vmatpush.xpose.msra.mxu0 0.0
    %944 = vmatpush.xpose.msra.mxu0 0.0
    %945 = vmatpush.xpose.msra.mxu0 0.0
    %946 = vmatpush.xpose.msra.mxu0 %v929
    %947 = vmatmul.f32.gmra.mxu0 %v927
    %v948 = vpop.f32.mrf.mxu0
    %v949 = vadd.f32 %v194, %v948
    %950 = vdwg.mxu0
    %v951 = vsel %vm252, %v921, -inf
    %952 = vmax.xlane.f32.xlu0 %v951
    %v953 = vpop.xlane.xlu0 %952
    %v954 = vsel %vm252, %v949, -inf
    %955 = vmax.xlane.f32.xlu0 %v954
    %v956 = vpop.xlane.xlu0 %955
    %v957 = vsub.f32 %v921, %v953
    %v958 = vsub.f32 %v949, %v956
    %v959 = vmul.f32 %v957, 1.442695
    %v960 = vpow.pop %v959
    %v961 = vmul.f32 %v958, 1.442695
    %v962 = vpow.pop %v961
    %v963 = vsel %vm252, %v960, 0.0
    %964 = vadd.xlane.f32.xlu0 %v963
    %v965 = vpop.xlane.xlu0 %964
    %v966 = vsel %vm252, %v962, 0.0
    %967 = vadd.xlane.f32.xlu0 %v966
    %v968 = vpop.xlane.xlu0 %967
    %v969 = vrcp.pop %v965
    %v970 = vrcp.pop %v968
    %v971 = vmul.f32 %v960, %v969
    %v972 = vmul.f32 %v962, %v970
    %973 = vrot.lane.b32.xlu0 %v729, 48
    %v974 = vpop.permute.xlu0 %973
    %v977 = vsel %vm252, %v971, 0
    %979 = vmatpush.msra.mxu0 0.0
    %980 = vmatpush.msra.mxu0 0.0
    %981 = vmatpush.msra.mxu0 0.0
    %982 = vmatpush.msra.mxu0 0.0
    %983 = vmatpush.msra.mxu0 0.0
    %984 = vmatpush.msra.mxu0 0.0
    %985 = vmatpush.msra.mxu0 0.0
    %986 = vmatpush.msra.mxu0 0.0
    %987 = vmatpush.msra.mxu0 0.0
    %988 = vmatpush.msra.mxu0 0.0
    %989 = vmatpush.msra.mxu0 0.0
    %990 = vmatpush.msra.mxu0 0.0
    %991 = vmatpush.msra.mxu0 0.0
    %992 = vmatpush.msra.mxu0 0.0
    %993 = vmatpush.msra.mxu0 0.0
    %994 = vmatpush.msra.mxu0 %v974
    %995 = vmatmul.f32.gmra.mxu0 %v977
    %v996 = vpop.f32.mrf.mxu0
    %v997 = vadd.f32 0.0, %v996
    %998 = vdwg.mxu0
    %999 = vrot.lane.b32.xlu0 %v732, 48
    %v1000 = vpop.permute.xlu0 %999
    %v1003 = vsel %vm252, %v972, 0
    %1005 = vmatpush.msra.mxu0 0.0
    %1006 = vmatpush.msra.mxu0 0.0
    %1007 = vmatpush.msra.mxu0 0.0
    %1008 = vmatpush.msra.mxu0 0.0
    %1009 = vmatpush.msra.mxu0 0.0
    %1010 = vmatpush.msra.mxu0 0.0
    %1011 = vmatpush.msra.mxu0 0.0
    %1012 = vmatpush.msra.mxu0 0.0
    %1013 = vmatpush.msra.mxu0 0.0
    %1014 = vmatpush.msra.mxu0 0.0
    %1015 = vmatpush.msra.mxu0 0.0
    %1016 = vmatpush.msra.mxu0 0.0
    %1017 = vmatpush.msra.mxu0 0.0
    %1018 = vmatpush.msra.mxu0 0.0
    %1019 = vmatpush.msra.mxu0 0.0
    %1020 = vmatpush.msra.mxu0 %v1000
    %1021 = vmatmul.f32.gmra.mxu0 %v1003
    %v1022 = vpop.f32.mrf.mxu0
    %v1023 = vadd.f32 0.0, %v1022
    %1024 = vdwg.mxu0
    %v1025 = vld [vmem:[%s4 + $0x10] sm:$0xff]
    %v1026 = vld [vmem:[%s4 + $0x18] sm:$0xff]
    %v1028 = vsel %vm200, %v997, 0
    %v1031 = vsel %vm200, %v1023, 0
    %1033 = vmatpush.msra.mxu0 0.0
    %1034 = vmatpush.msra.mxu0 0.0
    %1035 = vmatpush.msra.mxu0 0.0
    %1036 = vmatpush.msra.mxu0 0.0
    %1037 = vmatpush.msra.mxu0 0.0
    %1038 = vmatpush.msra.mxu0 0.0
    %1039 = vmatpush.msra.mxu0 0.0
    %1040 = vmatpush.msra.mxu0 0.0
    %1041 = vmatpush.msra.mxu0 0.0
    %1042 = vmatpush.msra.mxu0 0.0
    %1043 = vmatpush.msra.mxu0 0.0
    %1044 = vmatpush.msra.mxu0 0.0
    %1045 = vmatpush.msra.mxu0 0.0
    %1046 = vmatpush.msra.mxu0 0.0
    %1047 = vmatpush.msra.mxu0 %v1026
    %1048 = vmatpush.msra.mxu0 %v1025
    %1049 = vmatmul.f32.gmra.mxu0 %v1028
    %v1050 = vpop.f32.mrf.mxu0
    %v1051 = vadd.f32 0.0, %v1050
    %1052 = vmatmul.f32.gmra.mxu0 %v1031
    %v1053 = vpop.f32.mrf.mxu0
    %v1054 = vadd.f32 0.0, %v1053
    %1055 = vdwg.mxu0
    %v1056 = vadd.f32 %v893, %v1051
    %v1057 = vadd.f32 %v894, %v1054
    %v1058 = vadd.f32 %v1056, %v651
    %v1059 = vadd.f32 %v1057, %v652
    %v1060 = vsel %vm99, %v1058, 0.0
    %1061 = vadd.xlane.f32.xlu0 %v1060
    %v1062 = vpop.xlane.xlu0 %1061
    %v1063 = vsel %vm99, %v1059, 0.0
    %1064 = vadd.xlane.f32.xlu0 %v1063
    %v1065 = vpop.xlane.xlu0 %1064
    %v1066 = vmul.f32 %v1062, %v112
    %v1067 = vmul.f32 %v1065, %v112
    %v1068 = vsub.f32 %v1058, %v1066
    %v1069 = vsub.f32 %v1059, %v1067
    %v1070 = vmul.f32 %v1068, %v1068
    %v1071 = vmul.f32 %v1069, %v1069
    %v1072 = vsel %vm99, %v1070, 0.0
    %1073 = vadd.xlane.f32.xlu0 %v1072
    %v1074 = vpop.xlane.xlu0 %1073
    %v1075 = vsel %vm99, %v1071, 0.0
    %1076 = vadd.xlane.f32.xlu0 %v1075
    %v1077 = vpop.xlane.xlu0 %1076
    %v1078 = vmul.f32 %v1074, %v112
    %v1079 = vmul.f32 %v1077, %v112
    %v1080 = vadd.f32 %v1078, 1e-05
    %v1081 = vadd.f32 %v1079, 1e-05
    %v1082 = vrsqrt.pop %v1080
    %v1083 = vmul.f32 %v1082, %v1080
    %v1084 = vmul.f32 %v1083, %v1082
    %v1085 = vmul.f32 0.5, %v1084
    %v1086 = vsub.f32 1.5, %v1085
    %v1087 = vmul.f32 %v1082, %v1086
    %vm1088 = vweird.f32 %v1080
    %vm1089 = vweird.f32 %v1082
    %vm1090 = vmor %vm1088, %vm1089
    %v1091 = vsel %vm1090, %v1082, %v1087
    %v1092 = vrsqrt.pop %v1081
    %v1093 = vmul.f32 %v1092, %v1081
    %v1094 = vmul.f32 %v1093, %v1092
    %v1095 = vmul.f32 0.5, %v1094
    %v1096 = vsub.f32 1.5, %v1095
    %v1097 = vmul.f32 %v1092, %v1096
    %vm1098 = vweird.f32 %v1081
    %vm1099 = vweird.f32 %v1092
    %vm1100 = vmor %vm1098, %vm1099
    %v1101 = vsel %vm1100, %v1092, %v1097
    %v1102 = vmul.f32 %v1068, %v1091
    %v1103 = vmul.f32 %v1069, %v1101
    %v1104 = vmul.f32 %v1102, %v570
    %v1105 = vmul.f32 %v1103, %v570
    %v1106 = vadd.f32 %v1104, %v573
    %v1107 = vadd.f32 %v1105, %v573
    %v1108 = vld [vmem:[%s5] sm:$0xff]
    %v1109 = vld [vmem:[%s5 + $0x8] sm:$0xff]
    %v1110 = vld [vmem:[%s5 + $0x10] sm:$0xff]
    %v1111 = vld [vmem:[%s5 + $0x18] sm:$0xff]
    %v1113 = vsel %vm99, %v1106, 0
    %v1116 = vsel %vm99, %v1107, 0
    %1118 = vmatpush.msra.mxu0 0.0
    %1119 = vmatpush.msra.mxu0 0.0
    %1120 = vmatpush.msra.mxu0 0.0
    %1121 = vmatpush.msra.mxu0 0.0
    %1122 = vmatpush.msra.mxu0 0.0
    %1123 = vmatpush.msra.mxu0 0.0
    %1124 = vmatpush.msra.mxu0 0.0
    %1125 = vmatpush.msra.mxu0 0.0
    %1126 = vmatpush.msra.mxu0 0.0
    %1127 = vmatpush.msra.mxu0 0.0
    %1128 = vmatpush.msra.mxu0 0.0
    %1129 = vmatpush.msra.mxu0 0.0
    %1130 = vmatpush.msra.mxu0 %v1111
    %1131 = vmatpush.msra.mxu0 %v1110
    %1132 = vmatpush.msra.mxu0 %v1109
    %1133 = vmatpush.msra.mxu0 %v1108
    %1134 = vmatmul.f32.gmra.mxu0 %v1113
    %v1135 = vpop.f32.mrf.mxu0
    %v1136 = vadd.f32 %v580, %v1135
    %1137 = vmatmul.f32.gmra.mxu0 %v1116
    %v1138 = vpop.f32.mrf.mxu0
    %v1139 = vadd.f32 %v580, %v1138
    %1140 = vdwg.mxu0
    %v1141 = vmax.f32 %v1136, 0.0
    %v1142 = vmax.f32 %v1139, 0.0
    %v1143 = vld [vmem:[%s6] sm:$0xff]
    %v1144 = vld [vmem:[%s6 + $0x8] sm:$0xff]
    %v1145 = vld [vmem:[%s6 + $0x10] sm:$0xff]
    %v1146 = vld [vmem:[%s6 + $0x18] sm:$0xff]
    %v1147 = vld [vmem:[%s6 + $0x20] sm:$0xff]
    %v1148 = vld [vmem:[%s6 + $0x28] sm:$0xff]
    %v1149 = vld [vmem:[%s6 + $0x30] sm:$0xff]
    %v1150 = vld [vmem:[%s6 + $0x38] sm:$0xff]
    %v1152 = vsel %vm621, %v1141, 0
    %v1155 = vsel %vm621, %v1142, 0
    %1157 = vmatpush.msra.mxu0 0.0
    %1158 = vmatpush.msra.mxu0 0.0
    %1159 = vmatpush.msra.mxu0 0.0
    %1160 = vmatpush.msra.mxu0 0.0
    %1161 = vmatpush.msra.mxu0 0.0
    %1162 = vmatpush.msra.mxu0 0.0
    %1163 = vmatpush.msra.mxu0 0.0
    %1164 = vmatpush.msra.mxu0 0.0
    %1165 = vmatpush.msra.mxu0 %v1150
    %1166 = vmatpush.msra.mxu0 %v1149
    %1167 = vmatpush.msra.mxu0 %v1148
    %1168 = vmatpush.msra.mxu0 %v1147
    %1169 = vmatpush.msra.mxu0 %v1146
    %1170 = vmatpush.msra.mxu0 %v1145
    %1171 = vmatpush.msra.mxu0 %v1144
    %1172 = vmatpush.msra.mxu0 %v1143
    %1173 = vmatmul.f32.gmra.mxu0 %v1152
    %v1174 = vpop.f32.mrf.mxu0
    %v1175 = vadd.f32 %v620, %v1174
    %1176 = vmatmul.f32.gmra.mxu0 %v1155
    %v1177 = vpop.f32.mrf.mxu0
    %v1178 = vadd.f32 %v620, %v1177
    %1179 = vdwg.mxu0
    %v1180 = vadd.f32 %v1175, %v1058
    %v1181 = vadd.f32 %v1178, %v1059
    %v1182 = vsel %vm99, %v1180, 0.0
    %1183 = vadd.xlane.f32.xlu0 %v1182
    %v1184 = vpop.xlane.xlu0 %1183
    %v1185 = vsel %vm99, %v1181, 0.0
    %1186 = vadd.xlane.f32.xlu0 %v1185
    %v1187 = vpop.xlane.xlu0 %1186
    %v1188 = vmul.f32 %v1184, %v112
    %v1189 = vmul.f32 %v1187, %v112
    %v1190 = vsub.f32 %v1180, %v1188
    %v1191 = vsub.f32 %v1181, %v1189
    %v1192 = vmul.f32 %v1190, %v1190
    %v1193 = vmul.f32 %v1191, %v1191
    %v1194 = vsel %vm99, %v1192, 0.0
    %1195 = vadd.xlane.f32.xlu0 %v1194
    %v1196 = vpop.xlane.xlu0 %1195
    %v1197 = vsel %vm99, %v1193, 0.0
    %1198 = vadd.xlane.f32.xlu0 %v1197
    %v1199 = vpop.xlane.xlu0 %1198
    %v1200 = vmul.f32 %v1196, %v112
    %v1201 = vmul.f32 %v1199, %v112
    %v1202 = vadd.f32 %v1200, 1e-05
    %v1203 = vadd.f32 %v1201, 1e-05
    %v1204 = vrsqrt.pop %v1202
    %v1205 = vmul.f32 %v1204, %v1202
    %v1206 = vmul.f32 %v1205, %v1204
    %v1207 = vmul.f32 0.5, %v1206
    %v1208 = vsub.f32 1.5, %v1207
    %v1209 = vmul.f32 %v1204, %v1208
    %vm1210 = vweird.f32 %v1202
    %vm1211 = vweird.f32 %v1204
    %vm1212 = vmor %vm1210, %vm1211
    %v1213 = vsel %vm1212, %v1204, %v1209
    %v1214 = vrsqrt.pop %v1203
    %v1215 = vmul.f32 %v1214, %v1203
    %v1216 = vmul.f32 %v1215, %v1214
    %v1217 = vmul.f32 0.5, %v1216
    %v1218 = vsub.f32 1.5, %v1217
    %v1219 = vmul.f32 %v1214, %v1218
    %vm1220 = vweird.f32 %v1203
    %vm1221 = vweird.f32 %v1214
    %vm1222 = vmor %vm1220, %vm1221
    %v1223 = vsel %vm1222, %v1214, %v1219
    %v1224 = vmul.f32 %v1190, %v1213
    %v1225 = vmul.f32 %v1191, %v1223
    %v1226 = vperm.slane %v93, 4
    %v1227 = vmul.f32 %v1224, %v1226
    %v1228 = vmul.f32 %v1225, %v1226
    %v1229 = vperm.slane %v93, 5
    %v1230 = vadd.f32 %v1227, %v1229
    %v1231 = vadd.f32 %v1228, %v1229
    %v1232 = vld [vmem:[#allocation7] sm:$0xff]
    %v1233 = vld [vmem:[#allocation7 + $0x8] sm:$0xff]
    %v1234 = vmul.f32 %v1230, %v1232
    %v1235 = vmul.f32 %v1231, %v1233
    %1236 = vst.msk [vmem:[#allocation10] sm:$0xff] %vm99, %v1234
    %1237 = vst.msk [vmem:[#allocation10 + $0x8] sm:$0xff] %vm99, %v1235
    // Predicated region
    $region50: #{tpu_custom_call.1} parent=1 // pred_check
      _
    $region51: #{tpu_custom_call.1} parent=1 // pred_check_branch
      %1239 = sbr.rel (0) target = $region53
    $region52: #{tpu_custom_call.1} parent=1 // pred_region
      %1241 = vsyncadd [#allocation4], 0
      %s1242 = sshll.u32 [#allocation10], 4
      %s1243 = int_to_ptr.vmem [resolvable:$true] %s1242
      %s1244 = sshll.u32 %s8, 4
      %s1245 = int_to_ptr.hbm [resolvable:$true] %s1244
      %1250 = dma.vmem_to_hbm [thread:$0]  %s1243, 256, %s1245, [#allocation4], 128, 128, 8
    $region53: #{tpu_custom_call.1} parent=1 // pred_fallthru
      _
    // Predicated region
    $region54: #{tpu_custom_call.1} parent=1 // pred_check
      _
    $region55: #{tpu_custom_call.1} parent=1 // pred_check_branch
      %1252 = sbr.rel (0) target = $region57
    $region56: #{tpu_custom_call.1} parent=1 // pred_region
      %1254 = dma.done [#allocation4], 256
    $region57: #{tpu_custom_call.1} parent=1 // pred_fallthru
      _
    %1255 = vsyncpa [#allocation3], 1
    %1256 = vsyncpa [#allocation6], 1
    %1257 = vsyncpa [#allocation9], 1
    %1258 = vsyncpa [#allocation4], 1

</llo_original>
